<compile_context>
chip_gen: v7x
topology: tpu7x:2x2x1
jax: 0.10.0
libtpu: 0.0.40
codegen_flags: <defaults>
</compile_context>

<pallas_src>
import functools

import numpy as np
import jax
import jax.numpy as jnp
from jax.experimental import pallas as pl
from jax.experimental.pallas import tpu as pltpu


# ----------------------------------------------------------------------------
# Kernel 1: fc + ReLU (row-tiled over the batch)
# ----------------------------------------------------------------------------
def _fc_relu_kernel(z_ref, wt_ref, b_ref, o_ref):
    y = jnp.dot(z_ref[...].astype(jnp.bfloat16), wt_ref[...],
                preferred_element_type=jnp.float32)
    o_ref[...] = jnp.maximum(y + b_ref[...], 0.0).astype(o_ref.dtype)


def fc_relu(z, wt_bf16, b_row, *, block_rows=128):
    """relu(z @ wt + b): z (B, D) f32, wt (D, H) bf16, b (1, H) f32 -> (B, H) bf16."""
    B, D = z.shape
    H = wt_bf16.shape[1]
    bm = min(B, block_rows)
    return pl.pallas_call(
        _fc_relu_kernel,
        grid=(pl.cdiv(B, bm),),
        in_specs=[pl.BlockSpec((bm, D), lambda i: (i, 0)),
                  pl.BlockSpec((D, H), lambda i: (0, 0)),
                  pl.BlockSpec((1, H), lambda i: (0, 0))],
        out_specs=pl.BlockSpec((bm, H), lambda i: (i, 0)),
        out_shape=jax.ShapeDtypeStruct((B, H), jnp.bfloat16),
        compiler_params=pltpu.CompilerParams(dimension_semantics=("parallel",)),
    )(z, wt_bf16, b_row)


# ----------------------------------------------------------------------------
# Kernel 2: fused upconv1..3 + resblock1..3 + conv_out + sigmoid
# ----------------------------------------------------------------------------
def _taps3(x, m_first, m_last, dtype):
    """[x_{l-1}; x_l; x_{l+1}] stacked along channels for a k=3 'same' conv.

    x is (C, N) with B_tile samples laid out side by side along lanes; the
    precomputed masks zero the columns whose neighbour falls outside the
    sample segment, so halos never leak across samples (or past the edges).
    """
    x_prev = jnp.roll(x, 1, axis=-1) * m_first
    x_next = jnp.roll(x, -1, axis=-1) * m_last
    return jnp.concatenate([x_prev.astype(dtype), x.astype(dtype),
                            x_next.astype(dtype)], axis=0)


def _decoder_kernel(h_ref, u1, r1, s1, u2, r2, s2, u3, r3, s3,
                    aff_ref, masks_ref, out_ref, *, chans, b_tile, l0):
    C8, C4, C2, C1 = chans
    x = h_ref[0].astype(jnp.float32)                       # (C8, b_tile*l0)
    stages = ((u1, r1, s1, C4), (u2, r2, s2, C2), (u3, r3, s3, C1))

    for idx, (up_ref, rb_ref, sel_ref, c_out) in enumerate(stages):
        n_in = b_tile * l0 * (2 ** idx)
        n_out = 2 * n_in
        col = 5 * idx
        # boundary masks for the current (input) and doubled (output) lengths
        mf_i = masks_ref[2 * idx:2 * idx + 1, 0:n_in]
        ml_i = masks_ref[2 * idx + 1:2 * idx + 2, 0:n_in]
        mf_o = masks_ref[2 * idx + 2:2 * idx + 3, 0:n_out]
        ml_o = masks_ref[2 * idx + 3:2 * idx + 4, 0:n_out]

        # -- ConvTranspose1d(k=4, s=2, p=1): single polyphase matmul
        #      even = W1@x + W3@x_prev ; odd = W2@x + W0@x_next
        #    then phase interleave with hoisted bf16 0/1 selector matmuls.
        xc = _taps3(x, mf_i, ml_i, jnp.bfloat16)           # (3*c_in, n_in)
        eo = jnp.dot(up_ref[...], xc,
                     preferred_element_type=jnp.float32)   # (2*c_out, n_in)
        eo = eo.astype(jnp.bfloat16)
        y = (jnp.dot(eo[0:c_out, :], sel_ref[0:n_in, :],
                     preferred_element_type=jnp.float32)
             + jnp.dot(eo[c_out:2 * c_out, :], sel_ref[n_in:2 * n_in, :],
                       preferred_element_type=jnp.float32))
        y = y + aff_ref[0:c_out, col + 0:col + 1]          # upconv bias

        # -- ResBlock1D (conv3 + folded-BN affine, f32 epilogue)
        hc = _taps3(y, mf_o, ml_o, jnp.bfloat16)
        t = jnp.dot(rb_ref[0:c_out, :], hc, preferred_element_type=jnp.float32)
        t = jnp.maximum(t * aff_ref[0:c_out, col + 1:col + 2]
                        + aff_ref[0:c_out, col + 2:col + 3], 0.0)
        tc = _taps3(t, mf_o, ml_o, jnp.bfloat16)
        t = jnp.dot(rb_ref[c_out:2 * c_out, :], tc,
                    preferred_element_type=jnp.float32)
        t = t * aff_ref[0:c_out, col + 3:col + 4] + aff_ref[0:c_out, col + 4:col + 5]
        x = jnp.maximum(t + y, 0.0)

    # -- conv_out (C1 -> 1, k=3, p=1) + sigmoid: VPU multiply-reduce,
    #    lane-dense (1, b_tile*output_length) output row.
    n_fin = b_tile * l0 * 8
    mf = masks_ref[6:7, 0:n_fin]
    ml = masks_ref[7:8, 0:n_fin]
    xc = _taps3(x, mf, ml, jnp.float32)                    # (3*C1, n_fin)
    w_col = aff_ref[0:3 * C1, 15:16]
    b_out = aff_ref[0:1, 16:17]
    yrow = jnp.sum(xc * w_col, axis=0, keepdims=True) + b_out
    out_ref[0] = jax.nn.sigmoid(yrow)


@functools.partial(jax.jit,
                   static_argnames=("output_length", "base_channels", "b_tile"))
def decoder_forward(z, prepped, *, output_length, base_channels, b_tile):
    B = z.shape[0]
    L0 = output_length // 8
    C8, C4, C2, C1 = (base_channels * 8, base_channels * 4,
                      base_channels * 2, base_channels)
    G = B // b_tile
    N0 = b_tile * L0
    N_fin = b_tile * output_length

    h = fc_relu(z, prepped["fc_wt"], prepped["fc_b"])      # (B, C8*L0) bf16
    # pack b_tile samples side by side along the lane axis (XLA-side, tiny)
    h = (h.reshape(G, b_tile, C8, L0)
          .transpose(0, 2, 1, 3)
          .reshape(G, C8, N0))

    weights = [prepped["up1"], prepped["rb1"], prepped["sel1"],
               prepped["up2"], prepped["rb2"], prepped["sel2"],
               prepped["up3"], prepped["rb3"], prepped["sel3"],
               prepped["aff"], prepped["masks"]]

    kernel = functools.partial(_decoder_kernel, chans=(C8, C4, C2, C1),
                               b_tile=b_tile, l0=L0)
    in_specs = [pl.BlockSpec((1, C8, N0), lambda g: (g, 0, 0))]
    # NOTE: every packed weight operand is 2-D by construction.
    in_specs += [pl.BlockSpec(a.shape, lambda g: (0, 0)) for a in weights]

    out = pl.pallas_call(
        kernel,
        grid=(G,),
        in_specs=in_specs,
        out_specs=pl.BlockSpec((1, 1, N_fin), lambda g: (g, 0, 0)),
        out_shape=jax.ShapeDtypeStruct((G, 1, N_fin), jnp.float32),
        compiler_params=pltpu.CompilerParams(dimension_semantics=("parallel",)),
    )(h, *weights)
    # (G, 1, b_tile*OL) -> (B, 1, OL): samples inside a group are contiguous.
    return out.reshape(B, 1, output_length)


# ----------------------------------------------------------------------------
# Parameters (deterministic init; shapes mirror the PyTorch __init__)
# ----------------------------------------------------------------------------
def _uniform(key, shape, bound):
    return jax.random.uniform(key, shape, jnp.float32, -bound, bound)


def init_params(key, output_length, latent_dim, base_channels):
    C8, C1 = base_channels * 8, base_channels
    L0 = output_length // 8
    ks = iter(jax.random.split(key, 64))
    p = {}
    H = C8 * L0
    kb = 1.0 / np.sqrt(latent_dim)
    p["fc_w"] = _uniform(next(ks), (H, latent_dim), kb)    # torch Linear layout
    p["fc_b"] = _uniform(next(ks), (H,), kb)

    def upconv(c_in, c_out):
        b = 1.0 / np.sqrt(c_out * 4)
        return (_uniform(next(ks), (c_in, c_out, 4), b),   # torch ConvT layout
                _uniform(next(ks), (c_out,), b))

    def conv(c_in, c_out, k):
        b = 1.0 / np.sqrt(c_in * k)
        return (_uniform(next(ks), (c_out, c_in, k), b),
                _uniform(next(ks), (c_out,), b))

    def resblock(c):
        w1, b1 = conv(c, c, 3)
        w2, b2 = conv(c, c, 3)
        def bnset():
            return (jax.random.uniform(next(ks), (c,), jnp.float32, 0.8, 1.2),   # gamma
                    jax.random.uniform(next(ks), (c,), jnp.float32, -0.2, 0.2),  # beta
                    jax.random.uniform(next(ks), (c,), jnp.float32, -0.2, 0.2),  # mean
                    jax.random.uniform(next(ks), (c,), jnp.float32, 0.8, 1.2))   # var
        g1, beta1, m1, v1 = bnset()
        g2, beta2, m2, v2 = bnset()
        return {"w1": w1, "b1": b1, "w2": w2, "b2": b2,
                "g1": g1, "beta1": beta1, "m1": m1, "v1": v1,
                "g2": g2, "beta2": beta2, "m2": m2, "v2": v2}

    cs = [base_channels * 8, base_channels * 4, base_channels * 2, base_channels]
    for s in (1, 2, 3):
        p[f"up{s}_w"], p[f"up{s}_b"] = upconv(cs[s - 1], cs[s])
        p[f"rb{s}"] = resblock(cs[s])
    p["out_w"], p["out_b"] = conv(C1, 1, 3)
    return p


def prepare_params(p, *, output_length, base_channels, batch, eps=1e-5):
    """One-time prep: BN folding, tap/phase weight packing, bf16 cast, hoisted
    interleave selectors, per-sample boundary masks, packed affine table."""
    L0 = output_length // 8
    C4, C1 = base_channels * 4, base_channels

    # samples packed per grid step (lane density); capped so the block-diagonal
    # interleave selectors stay small. NOTE: with very small batches this can
    # leave only one grid step (one v7x TensorCore); trade-off vs lane density.
    b_tile = 1
    for d in range(1, batch + 1):
        if batch % d == 0 and d * L0 <= 128:
            b_tile = d

    out = {"fc_wt": jnp.asarray(np.asarray(p["fc_w"]).T, jnp.bfloat16),
           "fc_b": jnp.asarray(np.asarray(p["fc_b"]).reshape(1, -1), jnp.float32)}

    def fold_bn(conv_b, gamma, beta, mean, var):
        scale = gamma / np.sqrt(var + eps)
        bias = (conv_b - mean) * scale + beta
        return scale, bias

    def conv_cat(wc):  # (C, C, 3) -> (C, 3C) matching [x_prev; x; x_next]
        wc = np.asarray(wc, np.float32)
        return np.concatenate([wc[:, :, 0], wc[:, :, 1], wc[:, :, 2]], axis=1)

    aff = np.zeros((C4, 17), np.float32)

    for idx, s in enumerate((1, 2, 3)):
        w_t = np.asarray(p[f"up{s}_w"], np.float32)        # (C_in, C_out, 4)
        c_in, c_out = w_t.shape[0], w_t.shape[1]
        zblk = np.zeros((c_out, c_in), np.float32)
        # even = W1@x + W3@x_prev ; odd = W2@x + W0@x_next, over [x_prev; x; x_next]
        row_e = np.concatenate([w_t[:, :, 3].T, w_t[:, :, 1].T, zblk], axis=1)
        row_o = np.concatenate([zblk, w_t[:, :, 2].T, w_t[:, :, 0].T], axis=1)
        out[f"up{s}"] = jnp.asarray(np.concatenate([row_e, row_o], axis=0),
                                    jnp.bfloat16)          # (2*C_out, 3*C_in)

        rb = p[f"rb{s}"]
        out[f"rb{s}"] = jnp.asarray(
            np.concatenate([conv_cat(rb["w1"]), conv_cat(rb["w2"])], axis=0),
            jnp.bfloat16)                                  # (2*C_out, 3*C_out)

        sc1, bi1 = fold_bn(np.asarray(rb["b1"]), np.asarray(rb["g1"]),
                           np.asarray(rb["beta1"]), np.asarray(rb["m1"]),
                           np.asarray(rb["v1"]))
        sc2, bi2 = fold_bn(np.asarray(rb["b2"]), np.asarray(rb["g2"]),
                           np.asarray(rb["beta2"]), np.asarray(rb["m2"]),
                           np.asarray(rb["v2"]))
        col = 5 * idx
        aff[:c_out, col + 0] = np.asarray(p[f"up{s}_b"], np.float32)
        aff[:c_out, col + 1] = sc1
        aff[:c_out, col + 2] = bi1
        aff[:c_out, col + 3] = sc2
        aff[:c_out, col + 4] = bi2

        # hoisted phase-interleave selectors (block-diagonal over packed samples)
        l_in = L0 * (2 ** idx)
        n_in = b_tile * l_in
        se = np.zeros((n_in, 2 * n_in), np.float32)
        so = np.zeros((n_in, 2 * n_in), np.float32)
        for b in range(b_tile):
            for m in range(l_in):
                se[b * l_in + m, b * 2 * l_in + 2 * m] = 1.0
                so[b * l_in + m, b * 2 * l_in + 2 * m + 1] = 1.0
        out[f"sel{s}"] = jnp.asarray(np.concatenate([se, so], axis=0),
                                     jnp.bfloat16)         # (2*n_in, 2*n_in)

    wo = np.asarray(p["out_w"], np.float32)                # (1, C1, 3)
    aff[:3 * C1, 15] = np.concatenate([wo[0, :, 0], wo[0, :, 1], wo[0, :, 2]])
    aff[0, 16] = float(np.asarray(p["out_b"]).reshape(-1)[0])
    out["aff"] = jnp.asarray(aff)

    # per-sample-segment halo masks (period L0*2^k), prefix-sliced in kernel
    n_max = b_tile * output_length
    masks = np.ones((8, n_max), np.float32)
    for k in range(4):
        period = L0 * (2 ** k)
        pos = np.arange(n_max) % period
        masks[2 * k, pos == 0] = 0.0
        masks[2 * k + 1, pos == period - 1] = 0.0
    out["masks"] = jnp.asarray(masks)
    return out, b_tile


# ----------------------------------------------------------------------------
# Pure-JAX reference of the PyTorch Decoder (inference-mode BatchNorm)
# ----------------------------------------------------------------------------
def decoder_reference(p, z, *, output_length, eps=1e-5):
    B = z.shape[0]
    L0 = output_length // 8
    h = jnp.maximum(z @ p["fc_w"].T + p["fc_b"], 0.0)
    x = h.reshape(B, -1, L0)

    def convT(x, w, b):                                    # k=4, s=2, p=1
        Bb, Cin, L = x.shape
        Cout = w.shape[1]
        out = jnp.zeros((Bb, Cout, 2 * L + 2), jnp.float32)
        for k in range(4):
            contrib = jnp.einsum("io,bil->bol", w[:, :, k], x)
            out = out.at[:, :, k:k + 2 * L:2].add(contrib)
        return out[:, :, 1:2 * L + 1] + b[None, :, None]

    def conv3(x, w, b):                                    # k=3, p=1
        L = x.shape[-1]
        xp = jnp.pad(x, ((0, 0), (0, 0), (1, 1)))
        out = sum(jnp.einsum("oi,bil->bol", w[:, :, k], xp[:, :, k:k + L])
                  for k in range(3))
        return out + b[None, :, None]

    def bn(x, g, beta, m, v):
        s = g * jax.lax.rsqrt(v + eps)
        return (x - m[None, :, None]) * s[None, :, None] + beta[None, :, None]

    def resblock(x, rb):
        h1 = jnp.maximum(bn(conv3(x, rb["w1"], rb["b1"]),
                            rb["g1"], rb["beta1"], rb["m1"], rb["v1"]), 0.0)
        h2 = bn(conv3(h1, rb["w2"], rb["b2"]),
                rb["g2"], rb["beta2"], rb["m2"], rb["v2"])
        return jnp.maximum(h2 + x, 0.0)

    for s in (1, 2, 3):
        x = convT(x, p[f"up{s}_w"], p[f"up{s}_b"])
        x = resblock(x, p[f"rb{s}"])
    return jax.nn.sigmoid(conv3(x, p["out_w"], p["out_b"]))


# ----------------------------------------------------------------------------
# Main
# ----------------------------------------------------------------------------
if __name__ == "__main__":
    output_length = 64        # small, divisible by 8 (PyTorch default was 1024)
    latent_dim = 16
    base_channels = 8
    batch = 2

    key = jax.random.PRNGKey(0)
    k_param, k_z = jax.random.split(key)
    params = init_params(k_param, output_length, latent_dim, base_channels)
    prepped, b_tile = prepare_params(params, output_length=output_length,
                                     base_channels=base_channels, batch=batch)
    z = jax.random.normal(k_z, (batch, latent_dim), jnp.float32)

    recon = decoder_forward(z, prepped, output_length=output_length,
                            base_channels=base_channels, b_tile=b_tile)
    recon = jax.block_until_ready(recon)

    assert recon.shape == (batch, 1, output_length), recon.shape
    assert bool(jnp.all(jnp.isfinite(recon)))
    assert bool(jnp.all((recon >= 0.0) & (recon <= 1.0)))   # sigmoid range

    ref = decoder_reference(params, z, output_length=output_length)
    err = float(jnp.max(jnp.abs(recon - ref)))
    assert err < 5e-2, f"max |pallas - reference| = {err}"   # bf16 MXU drift budget
    print("KERNEL_OK")
</pallas_src>

<mosaic_0001>
module attributes {stable_mosaic.version = 11 : i64} {
  func.func @_fc_relu_kernel(%arg0: i32, %arg1: memref<2x16xf32, #tpu.memory_space<vmem>>, %arg2: memref<16x512xbf16, #tpu.memory_space<vmem>>, %arg3: memref<1x512xf32, #tpu.memory_space<vmem>>, %arg4: memref<2x512xbf16, #tpu.memory_space<vmem>>) attributes {dimension_semantics = [#tpu.dimension_semantics<parallel>], iteration_bounds = array<i64: 1>, scalar_prefetch = 0 : i64, scratch_operands = 0 : i64, tpu.core_type = #tpu.core_type<tc>, window_params = [{transform_indices = @transform_0, window_bounds = array<i64: 2, 16>}, {pipeline_mode = #tpu.pipeline_mode<synchronous>, transform_indices = @transform_1, window_bounds = array<i64: 16, 512>}, {pipeline_mode = #tpu.pipeline_mode<synchronous>, transform_indices = @transform_2, window_bounds = array<i64: 1, 512>}, {transform_indices = @transform_3, window_bounds = array<i64: 2, 512>}]} {
    %c0 = arith.constant 0 : index
    %c0_0 = arith.constant 0 : index
    %0 = vector.load %arg1[%c0, %c0_0] : memref<2x16xf32, #tpu.memory_space<vmem>>, vector<2x16xf32>
    %1 = arith.truncf %0 : vector<2x16xf32> to vector<2x16xbf16>
    %c0_1 = arith.constant 0 : index
    %c0_2 = arith.constant 0 : index
    %2 = vector.load %arg2[%c0_1, %c0_2] : memref<16x512xbf16, #tpu.memory_space<vmem>>, vector<16x512xbf16>
    %cst = arith.constant dense<0.000000e+00> : vector<2x512xf32>
    %3 = tpu.matmul %1, %2, %cst {dimension_numbers = #tpu.dot_dimension_numbers<[1], [0], [0], [1], [0, 0, 1, 1], [], []>} : vector<2x16xbf16>, vector<16x512xbf16>, vector<2x512xf32> -> vector<2x512xf32>
    %c0_3 = arith.constant 0 : index
    %c0_4 = arith.constant 0 : index
    %4 = vector.load %arg3[%c0_3, %c0_4] : memref<1x512xf32, #tpu.memory_space<vmem>>, vector<1x512xf32>
    %5 = vector.broadcast %4 : vector<1x512xf32> to vector<2x512xf32>
    %6 = arith.addf %3, %5 : vector<2x512xf32>
    %cst_5 = arith.constant 0.000000e+00 : f32
    %7 = vector.broadcast %cst_5 : f32 to vector<2x512xf32>
    %8 = arith.maximumf %6, %7 : vector<2x512xf32>
    %9 = arith.truncf %8 : vector<2x512xf32> to vector<2x512xbf16>
    %c0_6 = arith.constant 0 : index
    %c0_7 = arith.constant 0 : index
    %10 = vector.load %arg4[%c0_6, %c0_7] : memref<2x512xbf16, #tpu.memory_space<vmem>>, vector<2x512xbf16>
    tpu.vector_store %arg4[%c0_6, %c0_7], %9 {strides = array<i32>} : memref<2x512xbf16, #tpu.memory_space<vmem>>, vector<2x512xbf16>,
    return
  }
  func.func @transform_0(%arg0: i32) -> (i32, i32) {
    %c0_i32 = arith.constant 0 : i32
    %c0_i32_0 = arith.constant 0 : i32
    return %arg0, %c0_i32 : i32, i32
  }
  func.func @transform_1(%arg0: i32) -> (i32, i32) {
    %c0_i32 = arith.constant 0 : i32
    %c0_i32_0 = arith.constant 0 : i32
    %c0_i32_1 = arith.constant 0 : i32
    return %c0_i32, %c0_i32_0 : i32, i32
  }
  func.func @transform_2(%arg0: i32) -> (i32, i32) {
    %c0_i32 = arith.constant 0 : i32
    %c0_i32_0 = arith.constant 0 : i32
    %c0_i32_1 = arith.constant 0 : i32
    return %c0_i32, %c0_i32_0 : i32, i32
  }
  func.func @transform_3(%arg0: i32) -> (i32, i32) {
    %c0_i32 = arith.constant 0 : i32
    %c0_i32_0 = arith.constant 0 : i32
    return %arg0, %c0_i32 : i32, i32
  }
}

module attributes {stable_mosaic.version = 11 : i64} {
  func.func @_decoder_kernel(%arg0: i32, %arg1: memref<1x64x16xbf16, #tpu.memory_space<vmem>>, %arg2: memref<64x192xbf16, #tpu.memory_space<vmem>>, %arg3: memref<64x96xbf16, #tpu.memory_space<vmem>>, %arg4: memref<32x32xbf16, #tpu.memory_space<vmem>>, %arg5: memref<32x96xbf16, #tpu.memory_space<vmem>>, %arg6: memref<32x48xbf16, #tpu.memory_space<vmem>>, %arg7: memref<64x64xbf16, #tpu.memory_space<vmem>>, %arg8: memref<16x48xbf16, #tpu.memory_space<vmem>>, %arg9: memref<16x24xbf16, #tpu.memory_space<vmem>>, %arg10: memref<128x128xbf16, #tpu.memory_space<vmem>>, %arg11: memref<32x17xf32, #tpu.memory_space<vmem>>, %arg12: memref<8x128xf32, #tpu.memory_space<vmem>>, %arg13: memref<1x1x128xf32, #tpu.memory_space<vmem>>) attributes {dimension_semantics = [#tpu.dimension_semantics<parallel>], iteration_bounds = array<i64: 1>, scalar_prefetch = 0 : i64, scratch_operands = 0 : i64, tpu.core_type = #tpu.core_type<tc>, window_params = [{transform_indices = @transform_0, window_bounds = array<i64: 1, 64, 16>}, {pipeline_mode = #tpu.pipeline_mode<synchronous>, transform_indices = @transform_1, window_bounds = array<i64: 64, 192>}, {pipeline_mode = #tpu.pipeline_mode<synchronous>, transform_indices = @transform_2, window_bounds = array<i64: 64, 96>}, {pipeline_mode = #tpu.pipeline_mode<synchronous>, transform_indices = @transform_3, window_bounds = array<i64: 32, 32>}, {pipeline_mode = #tpu.pipeline_mode<synchronous>, transform_indices = @transform_4, window_bounds = array<i64: 32, 96>}, {pipeline_mode = #tpu.pipeline_mode<synchronous>, transform_indices = @transform_5, window_bounds = array<i64: 32, 48>}, {pipeline_mode = #tpu.pipeline_mode<synchronous>, transform_indices = @transform_6, window_bounds = array<i64: 64, 64>}, {pipeline_mode = #tpu.pipeline_mode<synchronous>, transform_indices = @transform_7, window_bounds = array<i64: 16, 48>}, {pipeline_mode = #tpu.pipeline_mode<synchronous>, transform_indices = @transform_8, window_bounds = array<i64: 16, 24>}, {pipeline_mode = #tpu.pipeline_mode<synchronous>, transform_indices = @transform_9, window_bounds = array<i64: 128, 128>}, {pipeline_mode = #tpu.pipeline_mode<synchronous>, transform_indices = @transform_10, window_bounds = array<i64: 32, 17>}, {pipeline_mode = #tpu.pipeline_mode<synchronous>, transform_indices = @transform_11, window_bounds = array<i64: 8, 128>}, {transform_indices = @transform_12, window_bounds = array<i64: 1, 1, 128>}]} {
    %c0 = arith.constant 0 : index
    %c0_0 = arith.constant 0 : index
    %c0_1 = arith.constant 0 : index
    %0 = vector.load %arg1[%c0, %c0_0, %c0_1] : memref<1x64x16xbf16, #tpu.memory_space<vmem>>, vector<1x64x16xbf16>
    %1 = vector.shape_cast %0 : vector<1x64x16xbf16> to vector<64x16xbf16>
    %2 = arith.extf %1 : vector<64x16xbf16> to vector<64x16xf32>
    %c0_2 = arith.constant 0 : index
    %c0_3 = arith.constant 0 : index
    %3 = vector.load %arg12[%c0_2, %c0_3] : memref<8x128xf32, #tpu.memory_space<vmem>>, vector<1x16xf32>
    %c1 = arith.constant 1 : index
    %c0_4 = arith.constant 0 : index
    %4 = vector.load %arg12[%c1, %c0_4] : memref<8x128xf32, #tpu.memory_space<vmem>>, vector<1x16xf32>
    %c2 = arith.constant 2 : index
    %c0_5 = arith.constant 0 : index
    %5 = vector.load %arg12[%c2, %c0_5] : memref<8x128xf32, #tpu.memory_space<vmem>>, vector<1x32xf32>
    %c3 = arith.constant 3 : index
    %c0_6 = arith.constant 0 : index
    %6 = vector.load %arg12[%c3, %c0_6] : memref<8x128xf32, #tpu.memory_space<vmem>>, vector<1x32xf32>
    %7 = vector.extract_strided_slice %2 {offsets = [0, 15], sizes = [64, 1], strides = [1, 1]} : vector<64x16xf32> to vector<64x1xf32>
    %8 = vector.extract_strided_slice %2 {offsets = [0, 0], sizes = [64, 15], strides = [1, 1]} : vector<64x16xf32> to vector<64x15xf32>
    %9 = tpu.concatenate %7, %8 in 1 : vector<64x1xf32>, vector<64x15xf32> -> vector<64x16xf32>
    %10 = vector.broadcast %3 : vector<1x16xf32> to vector<64x16xf32>
    %11 = arith.mulf %9, %10 : vector<64x16xf32>
    %12 = vector.extract_strided_slice %2 {offsets = [0, 1], sizes = [64, 15], strides = [1, 1]} : vector<64x16xf32> to vector<64x15xf32>
    %13 = vector.extract_strided_slice %2 {offsets = [0, 0], sizes = [64, 1], strides = [1, 1]} : vector<64x16xf32> to vector<64x1xf32>
    %14 = tpu.concatenate %12, %13 in 1 : vector<64x15xf32>, vector<64x1xf32> -> vector<64x16xf32>
    %15 = vector.broadcast %4 : vector<1x16xf32> to vector<64x16xf32>
    %16 = arith.mulf %14, %15 : vector<64x16xf32>
    %17 = arith.truncf %11 : vector<64x16xf32> to vector<64x16xbf16>
    %18 = arith.truncf %2 : vector<64x16xf32> to vector<64x16xbf16>
    %19 = arith.truncf %16 : vector<64x16xf32> to vector<64x16xbf16>
    %20 = tpu.concatenate %17, %18, %19 in 0 : vector<64x16xbf16>, vector<64x16xbf16>, vector<64x16xbf16> -> vector<192x16xbf16>
    %c0_7 = arith.constant 0 : index
    %c0_8 = arith.constant 0 : index
    %21 = vector.load %arg2[%c0_7, %c0_8] : memref<64x192xbf16, #tpu.memory_space<vmem>>, vector<64x192xbf16>
    %cst = arith.constant dense<0.000000e+00> : vector<64x16xf32>
    %22 = tpu.matmul %21, %20, %cst {dimension_numbers = #tpu.dot_dimension_numbers<[1], [0], [0], [1], [0, 0, 1, 1], [], []>} : vector<64x192xbf16>, vector<192x16xbf16>, vector<64x16xf32> -> vector<64x16xf32>
    %23 = arith.truncf %22 : vector<64x16xf32> to vector<64x16xbf16>
    %24 = vector.extract_strided_slice %23 {offsets = [0, 0], sizes = [32, 16], strides = [1, 1]} : vector<64x16xbf16> to vector<32x16xbf16>
    %c0_9 = arith.constant 0 : index
    %c0_10 = arith.constant 0 : index
    %25 = vector.load %arg4[%c0_9, %c0_10] : memref<32x32xbf16, #tpu.memory_space<vmem>>, vector<16x32xbf16>
    %cst_11 = arith.constant dense<0.000000e+00> : vector<32x32xf32>
    %26 = tpu.matmul %24, %25, %cst_11 {dimension_numbers = #tpu.dot_dimension_numbers<[1], [0], [0], [1], [0, 0, 1, 1], [], []>} : vector<32x16xbf16>, vector<16x32xbf16>, vector<32x32xf32> -> vector<32x32xf32>
    %27 = vector.extract_strided_slice %23 {offsets = [32, 0], sizes = [32, 16], strides = [1, 1]} : vector<64x16xbf16> to vector<32x16xbf16>
    %c16 = arith.constant 16 : index
    %c0_12 = arith.constant 0 : index
    %28 = vector.load %arg4[%c16, %c0_12] : memref<32x32xbf16, #tpu.memory_space<vmem>>, vector<16x32xbf16>
    %cst_13 = arith.constant dense<0.000000e+00> : vector<32x32xf32>
    %29 = tpu.matmul %27, %28, %cst_13 {dimension_numbers = #tpu.dot_dimension_numbers<[1], [0], [0], [1], [0, 0, 1, 1], [], []>} : vector<32x16xbf16>, vector<16x32xbf16>, vector<32x32xf32> -> vector<32x32xf32>
    %30 = arith.addf %26, %29 : vector<32x32xf32>
    %c0_14 = arith.constant 0 : index
    %c0_15 = arith.constant 0 : index
    %31 = vector.load %arg11[%c0_14, %c0_15] : memref<32x17xf32, #tpu.memory_space<vmem>>, vector<32x1xf32>
    %32 = vector.broadcast %31 : vector<32x1xf32> to vector<32x32xf32>
    %33 = arith.addf %30, %32 : vector<32x32xf32>
    %34 = vector.extract_strided_slice %33 {offsets = [0, 31], sizes = [32, 1], strides = [1, 1]} : vector<32x32xf32> to vector<32x1xf32>
    %35 = vector.extract_strided_slice %33 {offsets = [0, 0], sizes = [32, 31], strides = [1, 1]} : vector<32x32xf32> to vector<32x31xf32>
    %36 = tpu.concatenate %34, %35 in 1 : vector<32x1xf32>, vector<32x31xf32> -> vector<32x32xf32>
    %37 = vector.broadcast %5 : vector<1x32xf32> to vector<32x32xf32>
    %38 = arith.mulf %36, %37 : vector<32x32xf32>
    %39 = vector.extract_strided_slice %33 {offsets = [0, 1], sizes = [32, 31], strides = [1, 1]} : vector<32x32xf32> to vector<32x31xf32>
    %40 = vector.extract_strided_slice %33 {offsets = [0, 0], sizes = [32, 1], strides = [1, 1]} : vector<32x32xf32> to vector<32x1xf32>
    %41 = tpu.concatenate %39, %40 in 1 : vector<32x31xf32>, vector<32x1xf32> -> vector<32x32xf32>
    %42 = vector.broadcast %6 : vector<1x32xf32> to vector<32x32xf32>
    %43 = arith.mulf %41, %42 : vector<32x32xf32>
    %44 = arith.truncf %38 : vector<32x32xf32> to vector<32x32xbf16>
    %45 = arith.truncf %33 : vector<32x32xf32> to vector<32x32xbf16>
    %46 = arith.truncf %43 : vector<32x32xf32> to vector<32x32xbf16>
    %47 = tpu.concatenate %44, %45, %46 in 0 : vector<32x32xbf16>, vector<32x32xbf16>, vector<32x32xbf16> -> vector<96x32xbf16>
    %c0_16 = arith.constant 0 : index
    %c0_17 = arith.constant 0 : index
    %48 = vector.load %arg3[%c0_16, %c0_17] : memref<64x96xbf16, #tpu.memory_space<vmem>>, vector<32x96xbf16>
    %cst_18 = arith.constant dense<0.000000e+00> : vector<32x32xf32>
    %49 = tpu.matmul %48, %47, %cst_18 {dimension_numbers = #tpu.dot_dimension_numbers<[1], [0], [0], [1], [0, 0, 1, 1], [], []>} : vector<32x96xbf16>, vector<96x32xbf16>, vector<32x32xf32> -> vector<32x32xf32>
    %c0_19 = arith.constant 0 : index
    %c1_20 = arith.constant 1 : index
    %50 = vector.load %arg11[%c0_19, %c1_20] : memref<32x17xf32, #tpu.memory_space<vmem>>, vector<32x1xf32>
    %51 = vector.broadcast %50 : vector<32x1xf32> to vector<32x32xf32>
    %52 = arith.mulf %49, %51 : vector<32x32xf32>
    %c0_21 = arith.constant 0 : index
    %c2_22 = arith.constant 2 : index
    %53 = vector.load %arg11[%c0_21, %c2_22] : memref<32x17xf32, #tpu.memory_space<vmem>>, vector<32x1xf32>
    %54 = vector.broadcast %53 : vector<32x1xf32> to vector<32x32xf32>
    %55 = arith.addf %52, %54 : vector<32x32xf32>
    %cst_23 = arith.constant 0.000000e+00 : f32
    %56 = vector.broadcast %cst_23 : f32 to vector<32x32xf32>
    %57 = arith.maximumf %55, %56 : vector<32x32xf32>
    %58 = vector.extract_strided_slice %57 {offsets = [0, 31], sizes = [32, 1], strides = [1, 1]} : vector<32x32xf32> to vector<32x1xf32>
    %59 = vector.extract_strided_slice %57 {offsets = [0, 0], sizes = [32, 31], strides = [1, 1]} : vector<32x32xf32> to vector<32x31xf32>
    %60 = tpu.concatenate %58, %59 in 1 : vector<32x1xf32>, vector<32x31xf32> -> vector<32x32xf32>
    %61 = vector.broadcast %5 : vector<1x32xf32> to vector<32x32xf32>
    %62 = arith.mulf %60, %61 : vector<32x32xf32>
    %63 = vector.extract_strided_slice %57 {offsets = [0, 1], sizes = [32, 31], strides = [1, 1]} : vector<32x32xf32> to vector<32x31xf32>
    %64 = vector.extract_strided_slice %57 {offsets = [0, 0], sizes = [32, 1], strides = [1, 1]} : vector<32x32xf32> to vector<32x1xf32>
    %65 = tpu.concatenate %63, %64 in 1 : vector<32x31xf32>, vector<32x1xf32> -> vector<32x32xf32>
    %66 = vector.broadcast %6 : vector<1x32xf32> to vector<32x32xf32>
    %67 = arith.mulf %65, %66 : vector<32x32xf32>
    %68 = arith.truncf %62 : vector<32x32xf32> to vector<32x32xbf16>
    %69 = arith.truncf %57 : vector<32x32xf32> to vector<32x32xbf16>
    %70 = arith.truncf %67 : vector<32x32xf32> to vector<32x32xbf16>
    %71 = tpu.concatenate %68, %69, %70 in 0 : vector<32x32xbf16>, vector<32x32xbf16>, vector<32x32xbf16> -> vector<96x32xbf16>
    %c32 = arith.constant 32 : index
    %c0_24 = arith.constant 0 : index
    %72 = vector.load %arg3[%c32, %c0_24] : memref<64x96xbf16, #tpu.memory_space<vmem>>, vector<32x96xbf16>
    %cst_25 = arith.constant dense<0.000000e+00> : vector<32x32xf32>
    %73 = tpu.matmul %72, %71, %cst_25 {dimension_numbers = #tpu.dot_dimension_numbers<[1], [0], [0], [1], [0, 0, 1, 1], [], []>} : vector<32x96xbf16>, vector<96x32xbf16>, vector<32x32xf32> -> vector<32x32xf32>
    %c0_26 = arith.constant 0 : index
    %c3_27 = arith.constant 3 : index
    %74 = vector.load %arg11[%c0_26, %c3_27] : memref<32x17xf32, #tpu.memory_space<vmem>>, vector<32x1xf32>
    %75 = vector.broadcast %74 : vector<32x1xf32> to vector<32x32xf32>
    %76 = arith.mulf %73, %75 : vector<32x32xf32>
    %c0_28 = arith.constant 0 : index
    %c4 = arith.constant 4 : index
    %77 = vector.load %arg11[%c0_28, %c4] : memref<32x17xf32, #tpu.memory_space<vmem>>, vector<32x1xf32>
    %78 = vector.broadcast %77 : vector<32x1xf32> to vector<32x32xf32>
    %79 = arith.addf %76, %78 : vector<32x32xf32>
    %80 = arith.addf %79, %33 : vector<32x32xf32>
    %cst_29 = arith.constant 0.000000e+00 : f32
    %81 = vector.broadcast %cst_29 : f32 to vector<32x32xf32>
    %82 = arith.maximumf %80, %81 : vector<32x32xf32>
    %c2_30 = arith.constant 2 : index
    %c0_31 = arith.constant 0 : index
    %83 = vector.load %arg12[%c2_30, %c0_31] : memref<8x128xf32, #tpu.memory_space<vmem>>, vector<1x32xf32>
    %c3_32 = arith.constant 3 : index
    %c0_33 = arith.constant 0 : index
    %84 = vector.load %arg12[%c3_32, %c0_33] : memref<8x128xf32, #tpu.memory_space<vmem>>, vector<1x32xf32>
    %c4_34 = arith.constant 4 : index
    %c0_35 = arith.constant 0 : index
    %85 = vector.load %arg12[%c4_34, %c0_35] : memref<8x128xf32, #tpu.memory_space<vmem>>, vector<1x64xf32>
    %c5 = arith.constant 5 : index
    %c0_36 = arith.constant 0 : index
    %86 = vector.load %arg12[%c5, %c0_36] : memref<8x128xf32, #tpu.memory_space<vmem>>, vector<1x64xf32>
    %87 = vector.extract_strided_slice %82 {offsets = [0, 31], sizes = [32, 1], strides = [1, 1]} : vector<32x32xf32> to vector<32x1xf32>
    %88 = vector.extract_strided_slice %82 {offsets = [0, 0], sizes = [32, 31], strides = [1, 1]} : vector<32x32xf32> to vector<32x31xf32>
    %89 = tpu.concatenate %87, %88 in 1 : vector<32x1xf32>, vector<32x31xf32> -> vector<32x32xf32>
    %90 = vector.broadcast %83 : vector<1x32xf32> to vector<32x32xf32>
    %91 = arith.mulf %89, %90 : vector<32x32xf32>
    %92 = vector.extract_strided_slice %82 {offsets = [0, 1], sizes = [32, 31], strides = [1, 1]} : vector<32x32xf32> to vector<32x31xf32>
    %93 = vector.extract_strided_slice %82 {offsets = [0, 0], sizes = [32, 1], strides = [1, 1]} : vector<32x32xf32> to vector<32x1xf32>
    %94 = tpu.concatenate %92, %93 in 1 : vector<32x31xf32>, vector<32x1xf32> -> vector<32x32xf32>
    %95 = vector.broadcast %84 : vector<1x32xf32> to vector<32x32xf32>
    %96 = arith.mulf %94, %95 : vector<32x32xf32>
    %97 = arith.truncf %91 : vector<32x32xf32> to vector<32x32xbf16>
    %98 = arith.truncf %82 : vector<32x32xf32> to vector<32x32xbf16>
    %99 = arith.truncf %96 : vector<32x32xf32> to vector<32x32xbf16>
    %100 = tpu.concatenate %97, %98, %99 in 0 : vector<32x32xbf16>, vector<32x32xbf16>, vector<32x32xbf16> -> vector<96x32xbf16>
    %c0_37 = arith.constant 0 : index
    %c0_38 = arith.constant 0 : index
    %101 = vector.load %arg5[%c0_37, %c0_38] : memref<32x96xbf16, #tpu.memory_space<vmem>>, vector<32x96xbf16>
    %cst_39 = arith.constant dense<0.000000e+00> : vector<32x32xf32>
    %102 = tpu.matmul %101, %100, %cst_39 {dimension_numbers = #tpu.dot_dimension_numbers<[1], [0], [0], [1], [0, 0, 1, 1], [], []>} : vector<32x96xbf16>, vector<96x32xbf16>, vector<32x32xf32> -> vector<32x32xf32>
    %103 = arith.truncf %102 : vector<32x32xf32> to vector<32x32xbf16>
    %104 = vector.extract_strided_slice %103 {offsets = [0, 0], sizes = [16, 32], strides = [1, 1]} : vector<32x32xbf16> to vector<16x32xbf16>
    %c0_40 = arith.constant 0 : index
    %c0_41 = arith.constant 0 : index
    %105 = vector.load %arg7[%c0_40, %c0_41] : memref<64x64xbf16, #tpu.memory_space<vmem>>, vector<32x64xbf16>
    %cst_42 = arith.constant dense<0.000000e+00> : vector<16x64xf32>
    %106 = tpu.matmul %104, %105, %cst_42 {dimension_numbers = #tpu.dot_dimension_numbers<[1], [0], [0], [1], [0, 0, 1, 1], [], []>} : vector<16x32xbf16>, vector<32x64xbf16>, vector<16x64xf32> -> vector<16x64xf32>
    %107 = vector.extract_strided_slice %103 {offsets = [16, 0], sizes = [16, 32], strides = [1, 1]} : vector<32x32xbf16> to vector<16x32xbf16>
    %c32_43 = arith.constant 32 : index
    %c0_44 = arith.constant 0 : index
    %108 = vector.load %arg7[%c32_43, %c0_44] : memref<64x64xbf16, #tpu.memory_space<vmem>>, vector<32x64xbf16>
    %cst_45 = arith.constant dense<0.000000e+00> : vector<16x64xf32>
    %109 = tpu.matmul %107, %108, %cst_45 {dimension_numbers = #tpu.dot_dimension_numbers<[1], [0], [0], [1], [0, 0, 1, 1], [], []>} : vector<16x32xbf16>, vector<32x64xbf16>, vector<16x64xf32> -> vector<16x64xf32>
    %110 = arith.addf %106, %109 : vector<16x64xf32>
    %c0_46 = arith.constant 0 : index
    %c5_47 = arith.constant 5 : index
    %111 = vector.load %arg11[%c0_46, %c5_47] : memref<32x17xf32, #tpu.memory_space<vmem>>, vector<16x1xf32>
    %112 = vector.broadcast %111 : vector<16x1xf32> to vector<16x64xf32>
    %113 = arith.addf %110, %112 : vector<16x64xf32>
    %114 = vector.extract_strided_slice %113 {offsets = [0, 63], sizes = [16, 1], strides = [1, 1]} : vector<16x64xf32> to vector<16x1xf32>
    %115 = vector.extract_strided_slice %113 {offsets = [0, 0], sizes = [16, 63], strides = [1, 1]} : vector<16x64xf32> to vector<16x63xf32>
    %116 = tpu.concatenate %114, %115 in 1 : vector<16x1xf32>, vector<16x63xf32> -> vector<16x64xf32>
    %117 = vector.broadcast %85 : vector<1x64xf32> to vector<16x64xf32>
    %118 = arith.mulf %116, %117 : vector<16x64xf32>
    %119 = vector.extract_strided_slice %113 {offsets = [0, 1], sizes = [16, 63], strides = [1, 1]} : vector<16x64xf32> to vector<16x63xf32>
    %120 = vector.extract_strided_slice %113 {offsets = [0, 0], sizes = [16, 1], strides = [1, 1]} : vector<16x64xf32> to vector<16x1xf32>
    %121 = tpu.concatenate %119, %120 in 1 : vector<16x63xf32>, vector<16x1xf32> -> vector<16x64xf32>
    %122 = vector.broadcast %86 : vector<1x64xf32> to vector<16x64xf32>
    %123 = arith.mulf %121, %122 : vector<16x64xf32>
    %124 = arith.truncf %118 : vector<16x64xf32> to vector<16x64xbf16>
    %125 = arith.truncf %113 : vector<16x64xf32> to vector<16x64xbf16>
    %126 = arith.truncf %123 : vector<16x64xf32> to vector<16x64xbf16>
    %127 = tpu.concatenate %124, %125, %126 in 0 : vector<16x64xbf16>, vector<16x64xbf16>, vector<16x64xbf16> -> vector<48x64xbf16>
    %c0_48 = arith.constant 0 : index
    %c0_49 = arith.constant 0 : index
    %128 = vector.load %arg6[%c0_48, %c0_49] : memref<32x48xbf16, #tpu.memory_space<vmem>>, vector<16x48xbf16>
    %cst_50 = arith.constant dense<0.000000e+00> : vector<16x64xf32>
    %129 = tpu.matmul %128, %127, %cst_50 {dimension_numbers = #tpu.dot_dimension_numbers<[1], [0], [0], [1], [0, 0, 1, 1], [], []>} : vector<16x48xbf16>, vector<48x64xbf16>, vector<16x64xf32> -> vector<16x64xf32>
    %c0_51 = arith.constant 0 : index
    %c6 = arith.constant 6 : index
    %130 = vector.load %arg11[%c0_51, %c6] : memref<32x17xf32, #tpu.memory_space<vmem>>, vector<16x1xf32>
    %131 = vector.broadcast %130 : vector<16x1xf32> to vector<16x64xf32>
    %132 = arith.mulf %129, %131 : vector<16x64xf32>
    %c0_52 = arith.constant 0 : index
    %c7 = arith.constant 7 : index
    %133 = vector.load %arg11[%c0_52, %c7] : memref<32x17xf32, #tpu.memory_space<vmem>>, vector<16x1xf32>
    %134 = vector.broadcast %133 : vector<16x1xf32> to vector<16x64xf32>
    %135 = arith.addf %132, %134 : vector<16x64xf32>
    %cst_53 = arith.constant 0.000000e+00 : f32
    %136 = vector.broadcast %cst_53 : f32 to vector<16x64xf32>
    %137 = arith.maximumf %135, %136 : vector<16x64xf32>
    %138 = vector.extract_strided_slice %137 {offsets = [0, 63], sizes = [16, 1], strides = [1, 1]} : vector<16x64xf32> to vector<16x1xf32>
    %139 = vector.extract_strided_slice %137 {offsets = [0, 0], sizes = [16, 63], strides = [1, 1]} : vector<16x64xf32> to vector<16x63xf32>
    %140 = tpu.concatenate %138, %139 in 1 : vector<16x1xf32>, vector<16x63xf32> -> vector<16x64xf32>
    %141 = vector.broadcast %85 : vector<1x64xf32> to vector<16x64xf32>
    %142 = arith.mulf %140, %141 : vector<16x64xf32>
    %143 = vector.extract_strided_slice %137 {offsets = [0, 1], sizes = [16, 63], strides = [1, 1]} : vector<16x64xf32> to vector<16x63xf32>
    %144 = vector.extract_strided_slice %137 {offsets = [0, 0], sizes = [16, 1], strides = [1, 1]} : vector<16x64xf32> to vector<16x1xf32>
    %145 = tpu.concatenate %143, %144 in 1 : vector<16x63xf32>, vector<16x1xf32> -> vector<16x64xf32>
    %146 = vector.broadcast %86 : vector<1x64xf32> to vector<16x64xf32>
    %147 = arith.mulf %145, %146 : vector<16x64xf32>
    %148 = arith.truncf %142 : vector<16x64xf32> to vector<16x64xbf16>
    %149 = arith.truncf %137 : vector<16x64xf32> to vector<16x64xbf16>
    %150 = arith.truncf %147 : vector<16x64xf32> to vector<16x64xbf16>
    %151 = tpu.concatenate %148, %149, %150 in 0 : vector<16x64xbf16>, vector<16x64xbf16>, vector<16x64xbf16> -> vector<48x64xbf16>
    %c16_54 = arith.constant 16 : index
    %c0_55 = arith.constant 0 : index
    %152 = vector.load %arg6[%c16_54, %c0_55] : memref<32x48xbf16, #tpu.memory_space<vmem>>, vector<16x48xbf16>
    %cst_56 = arith.constant dense<0.000000e+00> : vector<16x64xf32>
    %153 = tpu.matmul %152, %151, %cst_56 {dimension_numbers = #tpu.dot_dimension_numbers<[1], [0], [0], [1], [0, 0, 1, 1], [], []>} : vector<16x48xbf16>, vector<48x64xbf16>, vector<16x64xf32> -> vector<16x64xf32>
    %c0_57 = arith.constant 0 : index
    %c8 = arith.constant 8 : index
    %154 = vector.load %arg11[%c0_57, %c8] : memref<32x17xf32, #tpu.memory_space<vmem>>, vector<16x1xf32>
    %155 = vector.broadcast %154 : vector<16x1xf32> to vector<16x64xf32>
    %156 = arith.mulf %153, %155 : vector<16x64xf32>
    %c0_58 = arith.constant 0 : index
    %c9 = arith.constant 9 : index
    %157 = vector.load %arg11[%c0_58, %c9] : memref<32x17xf32, #tpu.memory_space<vmem>>, vector<16x1xf32>
    %158 = vector.broadcast %157 : vector<16x1xf32> to vector<16x64xf32>
    %159 = arith.addf %156, %158 : vector<16x64xf32>
    %160 = arith.addf %159, %113 : vector<16x64xf32>
    %cst_59 = arith.constant 0.000000e+00 : f32
    %161 = vector.broadcast %cst_59 : f32 to vector<16x64xf32>
    %162 = arith.maximumf %160, %161 : vector<16x64xf32>
    %c4_60 = arith.constant 4 : index
    %c0_61 = arith.constant 0 : index
    %163 = vector.load %arg12[%c4_60, %c0_61] : memref<8x128xf32, #tpu.memory_space<vmem>>, vector<1x64xf32>
    %c5_62 = arith.constant 5 : index
    %c0_63 = arith.constant 0 : index
    %164 = vector.load %arg12[%c5_62, %c0_63] : memref<8x128xf32, #tpu.memory_space<vmem>>, vector<1x64xf32>
    %c6_64 = arith.constant 6 : index
    %c0_65 = arith.constant 0 : index
    %165 = vector.load %arg12[%c6_64, %c0_65] : memref<8x128xf32, #tpu.memory_space<vmem>>, vector<1x128xf32>
    %c7_66 = arith.constant 7 : index
    %c0_67 = arith.constant 0 : index
    %166 = vector.load %arg12[%c7_66, %c0_67] : memref<8x128xf32, #tpu.memory_space<vmem>>, vector<1x128xf32>
    %167 = vector.extract_strided_slice %162 {offsets = [0, 63], sizes = [16, 1], strides = [1, 1]} : vector<16x64xf32> to vector<16x1xf32>
    %168 = vector.extract_strided_slice %162 {offsets = [0, 0], sizes = [16, 63], strides = [1, 1]} : vector<16x64xf32> to vector<16x63xf32>
    %169 = tpu.concatenate %167, %168 in 1 : vector<16x1xf32>, vector<16x63xf32> -> vector<16x64xf32>
    %170 = vector.broadcast %163 : vector<1x64xf32> to vector<16x64xf32>
    %171 = arith.mulf %169, %170 : vector<16x64xf32>
    %172 = vector.extract_strided_slice %162 {offsets = [0, 1], sizes = [16, 63], strides = [1, 1]} : vector<16x64xf32> to vector<16x63xf32>
    %173 = vector.extract_strided_slice %162 {offsets = [0, 0], sizes = [16, 1], strides = [1, 1]} : vector<16x64xf32> to vector<16x1xf32>
    %174 = tpu.concatenate %172, %173 in 1 : vector<16x63xf32>, vector<16x1xf32> -> vector<16x64xf32>
    %175 = vector.broadcast %164 : vector<1x64xf32> to vector<16x64xf32>
    %176 = arith.mulf %174, %175 : vector<16x64xf32>
    %177 = arith.truncf %171 : vector<16x64xf32> to vector<16x64xbf16>
    %178 = arith.truncf %162 : vector<16x64xf32> to vector<16x64xbf16>
    %179 = arith.truncf %176 : vector<16x64xf32> to vector<16x64xbf16>
    %180 = tpu.concatenate %177, %178, %179 in 0 : vector<16x64xbf16>, vector<16x64xbf16>, vector<16x64xbf16> -> vector<48x64xbf16>
    %c0_68 = arith.constant 0 : index
    %c0_69 = arith.constant 0 : index
    %181 = vector.load %arg8[%c0_68, %c0_69] : memref<16x48xbf16, #tpu.memory_space<vmem>>, vector<16x48xbf16>
    %cst_70 = arith.constant dense<0.000000e+00> : vector<16x64xf32>
    %182 = tpu.matmul %181, %180, %cst_70 {dimension_numbers = #tpu.dot_dimension_numbers<[1], [0], [0], [1], [0, 0, 1, 1], [], []>} : vector<16x48xbf16>, vector<48x64xbf16>, vector<16x64xf32> -> vector<16x64xf32>
    %183 = arith.truncf %182 : vector<16x64xf32> to vector<16x64xbf16>
    %184 = vector.extract_strided_slice %183 {offsets = [0, 0], sizes = [8, 64], strides = [1, 1]} : vector<16x64xbf16> to vector<8x64xbf16>
    %c0_71 = arith.constant 0 : index
    %c0_72 = arith.constant 0 : index
    %185 = vector.load %arg10[%c0_71, %c0_72] : memref<128x128xbf16, #tpu.memory_space<vmem>>, vector<64x128xbf16>
    %cst_73 = arith.constant dense<0.000000e+00> : vector<8x128xf32>
    %186 = tpu.matmul %184, %185, %cst_73 {dimension_numbers = #tpu.dot_dimension_numbers<[1], [0], [0], [1], [0, 0, 1, 1], [], []>} : vector<8x64xbf16>, vector<64x128xbf16>, vector<8x128xf32> -> vector<8x128xf32>
    %187 = vector.extract_strided_slice %183 {offsets = [8, 0], sizes = [8, 64], strides = [1, 1]} : vector<16x64xbf16> to vector<8x64xbf16>
    %c64 = arith.constant 64 : index
    %c0_74 = arith.constant 0 : index
    %188 = vector.load %arg10[%c64, %c0_74] : memref<128x128xbf16, #tpu.memory_space<vmem>>, vector<64x128xbf16>
    %cst_75 = arith.constant dense<0.000000e+00> : vector<8x128xf32>
    %189 = tpu.matmul %187, %188, %cst_75 {dimension_numbers = #tpu.dot_dimension_numbers<[1], [0], [0], [1], [0, 0, 1, 1], [], []>} : vector<8x64xbf16>, vector<64x128xbf16>, vector<8x128xf32> -> vector<8x128xf32>
    %190 = arith.addf %186, %189 : vector<8x128xf32>
    %c0_76 = arith.constant 0 : index
    %c10 = arith.constant 10 : index
    %191 = vector.load %arg11[%c0_76, %c10] : memref<32x17xf32, #tpu.memory_space<vmem>>, vector<8x1xf32>
    %192 = vector.broadcast %191 : vector<8x1xf32> to vector<8x128xf32>
    %193 = arith.addf %190, %192 : vector<8x128xf32>
    %194 = vector.extract_strided_slice %193 {offsets = [0, 127], sizes = [8, 1], strides = [1, 1]} : vector<8x128xf32> to vector<8x1xf32>
    %195 = vector.extract_strided_slice %193 {offsets = [0, 0], sizes = [8, 127], strides = [1, 1]} : vector<8x128xf32> to vector<8x127xf32>
    %196 = tpu.concatenate %194, %195 in 1 : vector<8x1xf32>, vector<8x127xf32> -> vector<8x128xf32>
    %197 = vector.broadcast %165 : vector<1x128xf32> to vector<8x128xf32>
    %198 = arith.mulf %196, %197 : vector<8x128xf32>
    %199 = vector.extract_strided_slice %193 {offsets = [0, 1], sizes = [8, 127], strides = [1, 1]} : vector<8x128xf32> to vector<8x127xf32>
    %200 = vector.extract_strided_slice %193 {offsets = [0, 0], sizes = [8, 1], strides = [1, 1]} : vector<8x128xf32> to vector<8x1xf32>
    %201 = tpu.concatenate %199, %200 in 1 : vector<8x127xf32>, vector<8x1xf32> -> vector<8x128xf32>
    %202 = vector.broadcast %166 : vector<1x128xf32> to vector<8x128xf32>
    %203 = arith.mulf %201, %202 : vector<8x128xf32>
    %204 = arith.truncf %198 : vector<8x128xf32> to vector<8x128xbf16>
    %205 = arith.truncf %193 : vector<8x128xf32> to vector<8x128xbf16>
    %206 = arith.truncf %203 : vector<8x128xf32> to vector<8x128xbf16>
    %207 = tpu.concatenate %204, %205, %206 in 0 : vector<8x128xbf16>, vector<8x128xbf16>, vector<8x128xbf16> -> vector<24x128xbf16>
    %c0_77 = arith.constant 0 : index
    %c0_78 = arith.constant 0 : index
    %208 = vector.load %arg9[%c0_77, %c0_78] : memref<16x24xbf16, #tpu.memory_space<vmem>>, vector<8x24xbf16>
    %cst_79 = arith.constant dense<0.000000e+00> : vector<8x128xf32>
    %209 = tpu.matmul %208, %207, %cst_79 {dimension_numbers = #tpu.dot_dimension_numbers<[1], [0], [0], [1], [0, 0, 1, 1], [], []>} : vector<8x24xbf16>, vector<24x128xbf16>, vector<8x128xf32> -> vector<8x128xf32>
    %c0_80 = arith.constant 0 : index
    %c11 = arith.constant 11 : index
    %210 = vector.load %arg11[%c0_80, %c11] : memref<32x17xf32, #tpu.memory_space<vmem>>, vector<8x1xf32>
    %211 = vector.broadcast %210 : vector<8x1xf32> to vector<8x128xf32>
    %212 = arith.mulf %209, %211 : vector<8x128xf32>
    %c0_81 = arith.constant 0 : index
    %c12 = arith.constant 12 : index
    %213 = vector.load %arg11[%c0_81, %c12] : memref<32x17xf32, #tpu.memory_space<vmem>>, vector<8x1xf32>
    %214 = vector.broadcast %213 : vector<8x1xf32> to vector<8x128xf32>
    %215 = arith.addf %212, %214 : vector<8x128xf32>
    %cst_82 = arith.constant 0.000000e+00 : f32
    %216 = vector.broadcast %cst_82 : f32 to vector<8x128xf32>
    %217 = arith.maximumf %215, %216 : vector<8x128xf32>
    %218 = vector.extract_strided_slice %217 {offsets = [0, 127], sizes = [8, 1], strides = [1, 1]} : vector<8x128xf32> to vector<8x1xf32>
    %219 = vector.extract_strided_slice %217 {offsets = [0, 0], sizes = [8, 127], strides = [1, 1]} : vector<8x128xf32> to vector<8x127xf32>
    %220 = tpu.concatenate %218, %219 in 1 : vector<8x1xf32>, vector<8x127xf32> -> vector<8x128xf32>
    %221 = vector.broadcast %165 : vector<1x128xf32> to vector<8x128xf32>
    %222 = arith.mulf %220, %221 : vector<8x128xf32>
    %223 = vector.extract_strided_slice %217 {offsets = [0, 1], sizes = [8, 127], strides = [1, 1]} : vector<8x128xf32> to vector<8x127xf32>
    %224 = vector.extract_strided_slice %217 {offsets = [0, 0], sizes = [8, 1], strides = [1, 1]} : vector<8x128xf32> to vector<8x1xf32>
    %225 = tpu.concatenate %223, %224 in 1 : vector<8x127xf32>, vector<8x1xf32> -> vector<8x128xf32>
    %226 = vector.broadcast %166 : vector<1x128xf32> to vector<8x128xf32>
    %227 = arith.mulf %225, %226 : vector<8x128xf32>
    %228 = arith.truncf %222 : vector<8x128xf32> to vector<8x128xbf16>
    %229 = arith.truncf %217 : vector<8x128xf32> to vector<8x128xbf16>
    %230 = arith.truncf %227 : vector<8x128xf32> to vector<8x128xbf16>
    %231 = tpu.concatenate %228, %229, %230 in 0 : vector<8x128xbf16>, vector<8x128xbf16>, vector<8x128xbf16> -> vector<24x128xbf16>
    %c8_83 = arith.constant 8 : index
    %c0_84 = arith.constant 0 : index
    %232 = vector.load %arg9[%c8_83, %c0_84] : memref<16x24xbf16, #tpu.memory_space<vmem>>, vector<8x24xbf16>
    %cst_85 = arith.constant dense<0.000000e+00> : vector<8x128xf32>
    %233 = tpu.matmul %232, %231, %cst_85 {dimension_numbers = #tpu.dot_dimension_numbers<[1], [0], [0], [1], [0, 0, 1, 1], [], []>} : vector<8x24xbf16>, vector<24x128xbf16>, vector<8x128xf32> -> vector<8x128xf32>
    %c0_86 = arith.constant 0 : index
    %c13 = arith.constant 13 : index
    %234 = vector.load %arg11[%c0_86, %c13] : memref<32x17xf32, #tpu.memory_space<vmem>>, vector<8x1xf32>
    %235 = vector.broadcast %234 : vector<8x1xf32> to vector<8x128xf32>
    %236 = arith.mulf %233, %235 : vector<8x128xf32>
    %c0_87 = arith.constant 0 : index
    %c14 = arith.constant 14 : index
    %237 = vector.load %arg11[%c0_87, %c14] : memref<32x17xf32, #tpu.memory_space<vmem>>, vector<8x1xf32>
    %238 = vector.broadcast %237 : vector<8x1xf32> to vector<8x128xf32>
    %239 = arith.addf %236, %238 : vector<8x128xf32>
    %240 = arith.addf %239, %193 : vector<8x128xf32>
    %cst_88 = arith.constant 0.000000e+00 : f32
    %241 = vector.broadcast %cst_88 : f32 to vector<8x128xf32>
    %242 = arith.maximumf %240, %241 : vector<8x128xf32>
    %c6_89 = arith.constant 6 : index
    %c0_90 = arith.constant 0 : index
    %243 = vector.load %arg12[%c6_89, %c0_90] : memref<8x128xf32, #tpu.memory_space<vmem>>, vector<1x128xf32>
    %c7_91 = arith.constant 7 : index
    %c0_92 = arith.constant 0 : index
    %244 = vector.load %arg12[%c7_91, %c0_92] : memref<8x128xf32, #tpu.memory_space<vmem>>, vector<1x128xf32>
    %245 = vector.extract_strided_slice %242 {offsets = [0, 127], sizes = [8, 1], strides = [1, 1]} : vector<8x128xf32> to vector<8x1xf32>
    %246 = vector.extract_strided_slice %242 {offsets = [0, 0], sizes = [8, 127], strides = [1, 1]} : vector<8x128xf32> to vector<8x127xf32>
    %247 = tpu.concatenate %245, %246 in 1 : vector<8x1xf32>, vector<8x127xf32> -> vector<8x128xf32>
    %248 = vector.broadcast %243 : vector<1x128xf32> to vector<8x128xf32>
    %249 = arith.mulf %247, %248 : vector<8x128xf32>
    %250 = vector.extract_strided_slice %242 {offsets = [0, 1], sizes = [8, 127], strides = [1, 1]} : vector<8x128xf32> to vector<8x127xf32>
    %251 = vector.extract_strided_slice %242 {offsets = [0, 0], sizes = [8, 1], strides = [1, 1]} : vector<8x128xf32> to vector<8x1xf32>
    %252 = tpu.concatenate %250, %251 in 1 : vector<8x127xf32>, vector<8x1xf32> -> vector<8x128xf32>
    %253 = vector.broadcast %244 : vector<1x128xf32> to vector<8x128xf32>
    %254 = arith.mulf %252, %253 : vector<8x128xf32>
    %255 = tpu.concatenate %249, %242, %254 in 0 : vector<8x128xf32>, vector<8x128xf32>, vector<8x128xf32> -> vector<24x128xf32>
    %c0_93 = arith.constant 0 : index
    %c15 = arith.constant 15 : index
    %256 = vector.load %arg11[%c0_93, %c15] : memref<32x17xf32, #tpu.memory_space<vmem>>, vector<24x1xf32>
    %c0_94 = arith.constant 0 : index
    %c16_95 = arith.constant 16 : index
    %257 = vector.load %arg11[%c0_94, %c16_95] : memref<32x17xf32, #tpu.memory_space<vmem>>, vector<1x1xf32>
    %258 = vector.broadcast %256 : vector<24x1xf32> to vector<24x128xf32>
    %259 = arith.mulf %255, %258 : vector<24x128xf32>
    %cst_96 = arith.constant dense<0.000000e+00> : vector<128xf32>
    %260 = vector.multi_reduction <add>, %259, %cst_96 [0] : vector<24x128xf32> to vector<128xf32>
    %261 = vector.shape_cast %260 : vector<128xf32> to vector<1x128xf32>
    %262 = vector.broadcast %257 : vector<1x1xf32> to vector<1x128xf32>
    %263 = arith.addf %261, %262 : vector<1x128xf32>
    %264 = arith.negf %263 : vector<1x128xf32>
    %265 = math.exp %264 : vector<1x128xf32>
    %cst_97 = arith.constant 1.000000e+00 : f32
    %266 = vector.broadcast %cst_97 : f32 to vector<1x128xf32>
    %267 = arith.addf %266, %265 : vector<1x128xf32>
    %268 = arith.divf %266, %267 : vector<1x128xf32>
    %c0_98 = arith.constant 0 : index
    %c0_99 = arith.constant 0 : index
    %c0_100 = arith.constant 0 : index
    %269 = vector.load %arg13[%c0_98, %c0_99, %c0_100] : memref<1x1x128xf32, #tpu.memory_space<vmem>>, vector<1x1x128xf32>
    %270 = vector.shape_cast %269 : vector<1x1x128xf32> to vector<1x128xf32>
    %271 = vector.shape_cast %268 : vector<1x128xf32> to vector<1x1x128xf32>
    tpu.vector_store %arg13[%c0_98, %c0_99, %c0_100], %271 {strides = array<i32>} : memref<1x1x128xf32, #tpu.memory_space<vmem>>, vector<1x1x128xf32>,
    return
  }
  func.func @transform_0(%arg0: i32) -> (i32, i32, i32) {
    %c0_i32 = arith.constant 0 : i32
    %c0_i32_0 = arith.constant 0 : i32
    %c0_i32_1 = arith.constant 0 : i32
    return %arg0, %c0_i32, %c0_i32_0 : i32, i32, i32
  }
  func.func @transform_1(%arg0: i32) -> (i32, i32) {
    %c0_i32 = arith.constant 0 : i32
    %c0_i32_0 = arith.constant 0 : i32
    %c0_i32_1 = arith.constant 0 : i32
    return %c0_i32, %c0_i32_0 : i32, i32
  }
  func.func @transform_2(%arg0: i32) -> (i32, i32) {
    %c0_i32 = arith.constant 0 : i32
    %c0_i32_0 = arith.constant 0 : i32
    %c0_i32_1 = arith.constant 0 : i32
    return %c0_i32, %c0_i32_0 : i32, i32
  }
  func.func @transform_3(%arg0: i32) -> (i32, i32) {
    %c0_i32 = arith.constant 0 : i32
    %c0_i32_0 = arith.constant 0 : i32
    %c0_i32_1 = arith.constant 0 : i32
    return %c0_i32, %c0_i32_0 : i32, i32
  }
  func.func @transform_4(%arg0: i32) -> (i32, i32) {
    %c0_i32 = arith.constant 0 : i32
    %c0_i32_0 = arith.constant 0 : i32
    %c0_i32_1 = arith.constant 0 : i32
    return %c0_i32, %c0_i32_0 : i32, i32
  }
  func.func @transform_5(%arg0: i32) -> (i32, i32) {
    %c0_i32 = arith.constant 0 : i32
    %c0_i32_0 = arith.constant 0 : i32
    %c0_i32_1 = arith.constant 0 : i32
    return %c0_i32, %c0_i32_0 : i32, i32
  }
  func.func @transform_6(%arg0: i32) -> (i32, i32) {
    %c0_i32 = arith.constant 0 : i32
    %c0_i32_0 = arith.constant 0 : i32
    %c0_i32_1 = arith.constant 0 : i32
    return %c0_i32, %c0_i32_0 : i32, i32
  }
  func.func @transform_7(%arg0: i32) -> (i32, i32) {
    %c0_i32 = arith.constant 0 : i32
    %c0_i32_0 = arith.constant 0 : i32
    %c0_i32_1 = arith.constant 0 : i32
    return %c0_i32, %c0_i32_0 : i32, i32
  }
  func.func @transform_8(%arg0: i32) -> (i32, i32) {
    %c0_i32 = arith.constant 0 : i32
    %c0_i32_0 = arith.constant 0 : i32
    %c0_i32_1 = arith.constant 0 : i32
    return %c0_i32, %c0_i32_0 : i32, i32
  }
  func.func @transform_9(%arg0: i32) -> (i32, i32) {
    %c0_i32 = arith.constant 0 : i32
    %c0_i32_0 = arith.constant 0 : i32
    %c0_i32_1 = arith.constant 0 : i32
    return %c0_i32, %c0_i32_0 : i32, i32
  }
  func.func @transform_10(%arg0: i32) -> (i32, i32) {
    %c0_i32 = arith.constant 0 : i32
    %c0_i32_0 = arith.constant 0 : i32
    %c0_i32_1 = arith.constant 0 : i32
    return %c0_i32, %c0_i32_0 : i32, i32
  }
  func.func @transform_11(%arg0: i32) -> (i32, i32) {
    %c0_i32 = arith.constant 0 : i32
    %c0_i32_0 = arith.constant 0 : i32
    %c0_i32_1 = arith.constant 0 : i32
    return %c0_i32, %c0_i32_0 : i32, i32
  }
  func.func @transform_12(%arg0: i32) -> (i32, i32, i32) {
    %c0_i32 = arith.constant 0 : i32
    %c0_i32_0 = arith.constant 0 : i32
    %c0_i32_1 = arith.constant 0 : i32
    return %arg0, %c0_i32, %c0_i32_0 : i32, i32, i32
  }
}

</mosaic_0001>

<llo_original>
// kernel: decoder_forward.2
$region0: #{decoder_forward.2}
  #allocation0 [shape = 'u32[]', space=smem, size = 0x4, offset = 0x4, fixed_abs, tag = 'smem constant byte address 0x4 - core index']
  #allocation1 [shape = 'u32[144,128]{1,0:T(1,128)}', space=vmem, size = 0x12000, scoped, tag = 'internal scratch']
  %s0 = inlined_call_operand.vmem [shape: f32[2,16], index: 0, kind: input, shape index: {}]
  %s1 = inlined_call_operand.vmem [shape: bf16[16,512], index: 1, kind: input, shape index: {}]
  %s2 = inlined_call_operand.vmem [shape: f32[1,512], index: 2, kind: input, shape index: {}]
  %s3 = inlined_call_operand.vmem [shape: bf16[2,512], index: 3, kind: output, shape index: {}]
  %s4 = sld [smem:[#allocation0]]
  $region22: #{decoder_forward.2} parent=0
    _
  %s6 = ssub.s32 1, %s4
  %s7 = scalar_select 0, %s6, %s4
  // Predicated region
  $region2: #{decoder_forward.2} parent=0 // pred_check
    _
  $region3: #{decoder_forward.2} parent=0 // pred_check_branch
    %9 = sbr.rel (0) target = $region5
  $region4: #{decoder_forward.2} parent=0 // pred_region
    _
  $region5: #{decoder_forward.2} parent=0 // pred_fallthru
    _
  // Predicated region
  $region6: #{decoder_forward.2} parent=0 // pred_check
    _
  $region7: #{decoder_forward.2} parent=0 // pred_check_branch
    %11 = sbr.rel (0) target = $region9
  $region8: #{decoder_forward.2} parent=0 // pred_region
    _
  $region9: #{decoder_forward.2} parent=0 // pred_fallthru
    _
  // Predicated region
  $region10: #{decoder_forward.2} parent=0 // pred_check
    _
  $region11: #{decoder_forward.2} parent=0 // pred_check_branch
    %13 = sbr.rel (0) target = $region13
  $region12: #{decoder_forward.2} parent=0 // pred_region
    _
  $region13: #{decoder_forward.2} parent=0 // pred_fallthru
    _
  %v15 = vld [vmem:[%s0] sm:$0x3]
  %v16 = vpack.c.bf16 %v15, %v15
  %v17 = vld [vmem:[%s1] sm:$0xff]
  %v18 = vld [vmem:[%s1 + $0x8] sm:$0xff]
  %v19 = vld [vmem:[%s1 + $0x10] sm:$0xff]
  %v20 = vld [vmem:[%s1 + $0x18] sm:$0xff]
  %v21 = vld [vmem:[%s2] sm:$0xf]
  %v23 = vlaneseq
  %v24 = vshrl.u32 %v23, 7
  %v25 = vsub.s32 0, %v24
  %v26 = vrot.slane %v21, %v25
  %v27 = vlaneseq
  %v28 = vshrl.u32 %v27, 7
  %v29 = vsub.s32 1, %v28
  %v30 = vrot.slane %v21, %v29
  %v31 = vlaneseq
  %v32 = vshrl.u32 %v31, 7
  %v33 = vsub.s32 2, %v32
  %v34 = vrot.slane %v21, %v33
  %v35 = vlaneseq
  %v36 = vshrl.u32 %v35, 7
  %v37 = vsub.s32 3, %v36
  %v38 = vrot.slane %v21, %v37
  %v47 = vunpack.c.l.b16 %v17
  %v48 = vunpack.c.h.b16 %v17
  %v49 = vunpack.c.l.b16 %v18
  %v50 = vunpack.c.h.b16 %v18
  %v51 = vunpack.c.l.b16 %v19
  %v52 = vunpack.c.h.b16 %v19
  %v53 = vunpack.c.l.b16 %v20
  %v54 = vunpack.c.h.b16 %v20
  %v55 = vpack.c.b16 %v51, %v47
  %v56 = vpack.c.b16 %v52, %v48
  %v57 = vpack.c.b16 %v53, %v49
  %v58 = vpack.c.b16 %v54, %v50
  %vm63 = vcmask 130048
  %v65 = vsel %vm63, %v16, 0
  %67 = vmatprep.subr.bf16.mxu0 %v56
  %68 = vmatpush1.bf16.msra.mxu0 %v55
  %69 = vmatprep.subr.bf16.mxu0 0
  %70 = vmatpush1.bf16.msra.mxu0 0
  %71 = vmatprep.subr.bf16.mxu0 0
  %72 = vmatpush1.bf16.msra.mxu0 0
  %73 = vmatprep.subr.bf16.mxu0 0
  %74 = vmatpush1.bf16.msra.mxu0 0
  %75 = vmatprep.subr.bf16.mxu0 0
  %76 = vmatpush1.bf16.msra.mxu0 0
  %77 = vmatprep.subr.bf16.mxu0 0
  %78 = vmatpush1.bf16.msra.mxu0 0
  %79 = vmatprep.subr.bf16.mxu0 0
  %80 = vmatpush1.bf16.msra.mxu0 0
  %81 = vmatprep.subr.bf16.mxu0 0
  %82 = vmatpush1.bf16.msra.mxu0 0
  %83 = vmatprep.subr.bf16.mxu0 0
  %84 = vmatpush1.bf16.msra.mxu0 0
  %85 = vmatprep.subr.bf16.mxu0 0
  %86 = vmatpush1.bf16.msra.mxu0 0
  %87 = vmatprep.subr.bf16.mxu0 0
  %88 = vmatpush1.bf16.msra.mxu0 0
  %89 = vmatprep.subr.bf16.mxu0 0
  %90 = vmatpush1.bf16.msra.mxu0 0
  %91 = vmatprep.subr.bf16.mxu0 0
  %92 = vmatpush1.bf16.msra.mxu0 0
  %93 = vmatprep.subr.bf16.mxu0 0
  %94 = vmatpush1.bf16.msra.mxu0 0
  %95 = vmatprep.subr.bf16.mxu0 0
  %96 = vmatpush1.bf16.msra.mxu0 0
  %97 = vmatprep.subr.bf16.mxu0 0
  %98 = vmatpush1.bf16.msra.mxu0 0
  %99 = vmatprep.mubr.bf16.mxu0 0
  %100 = vmatmul.mubr.bf16.gmra.mrb[0].mxu0 %v65
  %v101 = vpop.f32.mrb[0].mxu0
  %v102 = vadd.f32 %v26, %v101
  %v103 = vpop.f32.mrb[0].mxu0
  %v104 = vadd.f32 %v30, %v103
  %v105 = vpop.f32.mrb[0].mxu0
  %v106 = vpop.f32.mrb[0].mxu0
  %107 = vdwg.mxu0
  %108 = vmatprep.subr.bf16.mxu0 %v58
  %109 = vmatpush1.bf16.msra.mxu0 %v57
  %110 = vmatprep.subr.bf16.mxu0 0
  %111 = vmatpush1.bf16.msra.mxu0 0
  %112 = vmatprep.subr.bf16.mxu0 0
  %113 = vmatpush1.bf16.msra.mxu0 0
  %114 = vmatprep.subr.bf16.mxu0 0
  %115 = vmatpush1.bf16.msra.mxu0 0
  %116 = vmatprep.subr.bf16.mxu0 0
  %117 = vmatpush1.bf16.msra.mxu0 0
  %118 = vmatprep.subr.bf16.mxu0 0
  %119 = vmatpush1.bf16.msra.mxu0 0
  %120 = vmatprep.subr.bf16.mxu0 0
  %121 = vmatpush1.bf16.msra.mxu0 0
  %122 = vmatprep.subr.bf16.mxu0 0
  %123 = vmatpush1.bf16.msra.mxu0 0
  %124 = vmatprep.subr.bf16.mxu0 0
  %125 = vmatpush1.bf16.msra.mxu0 0
  %126 = vmatprep.subr.bf16.mxu0 0
  %127 = vmatpush1.bf16.msra.mxu0 0
  %128 = vmatprep.subr.bf16.mxu0 0
  %129 = vmatpush1.bf16.msra.mxu0 0
  %130 = vmatprep.subr.bf16.mxu0 0
  %131 = vmatpush1.bf16.msra.mxu0 0
  %132 = vmatprep.subr.bf16.mxu0 0
  %133 = vmatpush1.bf16.msra.mxu0 0
  %134 = vmatprep.subr.bf16.mxu0 0
  %135 = vmatpush1.bf16.msra.mxu0 0
  %136 = vmatprep.subr.bf16.mxu0 0
  %137 = vmatpush1.bf16.msra.mxu0 0
  %138 = vmatprep.subr.bf16.mxu0 0
  %139 = vmatpush1.bf16.msra.mxu0 0
  %140 = vmatprep.mubr.bf16.mxu0 0
  %141 = vmatmul.mubr.bf16.gmra.mrb[0].mxu0 %v65
  %v142 = vpop.f32.mrb[0].mxu0
  %v143 = vadd.f32 %v34, %v142
  %v144 = vpop.f32.mrb[0].mxu0
  %v145 = vadd.f32 %v38, %v144
  %v146 = vpop.f32.mrb[0].mxu0
  %v147 = vpop.f32.mrb[0].mxu0
  %148 = vdwg.mxu0
  %v149 = vmax.f32 %v102, 0.0
  %v150 = vmax.f32 %v104, 0.0
  %v151 = vmax.f32 %v143, 0.0
  %v152 = vmax.f32 %v145, 0.0
  %v153 = vpack.c.bf16 %v149, %v149
  %v154 = vpack.c.bf16 %v150, %v150
  %v155 = vpack.c.bf16 %v151, %v151
  %v156 = vpack.c.bf16 %v152, %v152
  %v161 = vcombine.low %v153, %v154
  %v162 = vcombine.low %v155, %v156
  %v164 = vunpack.c.l.s4 1966171168
  %v165 = vunpack.c.0.s8 %v164
  %v166 = vlaneseq
  %v167 = vshrl.u32 %v166, 7
  %v168 = vsub.s32 %v165, %v167
  %v169 = vrot.slane %v161, %v168
  %v171 = vunpack.c.l.s4 1966171168
  %v172 = vunpack.c.0.s8 %v171
  %v173 = vlaneseq
  %v174 = vshrl.u32 %v173, 7
  %v175 = vsub.s32 %v172, %v174
  %v176 = vrot.slane %v162, %v175
  %v177 = vcombine.low %v169, %v176
  %v179 = vunpack.c.l.s4 1966171168
  %v180 = vunpack.c.0.s8 %v179
  %v181 = vlaneseq
  %v182 = vshrl.u32 %v181, 7
  %v183 = vsub.s32 %v180, %v182
  %v184 = vrot.slane %v177, %v183
  %186 = vst [vmem:[%s3] sm:$0xf] %v184
  // Predicated region
  $region14: #{decoder_forward.2} parent=0 // pred_check
    _
  $region15: #{decoder_forward.2} parent=0 // pred_check_branch
    %188 = sbr.rel (0) target = $region17
  $region16: #{decoder_forward.2} parent=0 // pred_region
    _
  $region17: #{decoder_forward.2} parent=0 // pred_fallthru
    _
  // Predicated region
  $region18: #{decoder_forward.2} parent=0 // pred_check
    _
  $region19: #{decoder_forward.2} parent=0 // pred_check_branch
    %190 = sbr.rel (0) target = $region21
  $region20: #{decoder_forward.2} parent=0 // pred_region
    _
  $region21: #{decoder_forward.2} parent=0 // pred_fallthru
    _

// kernel: decoder_forward.3
$region0: #{decoder_forward.3}
  #allocation0 [shape = 'u32[]', space=smem, size = 0x4, offset = 0x4, fixed_abs, tag = 'smem constant byte address 0x4 - core index']
  #allocation1 [shape = 'u32[144,128]{1,0:T(1,128)}', space=vmem, size = 0x12000, scoped, tag = 'internal scratch']
  %s0 = inlined_call_operand.vmem [shape: bf16[1,64,16], index: 0, kind: input, shape index: {}]
  %s1 = inlined_call_operand.vmem [shape: bf16[64,192], index: 1, kind: input, shape index: {}]
  %s2 = inlined_call_operand.vmem [shape: bf16[64,96], index: 2, kind: input, shape index: {}]
  %s3 = inlined_call_operand.vmem [shape: bf16[32,32], index: 3, kind: input, shape index: {}]
  %s4 = inlined_call_operand.vmem [shape: bf16[32,96], index: 4, kind: input, shape index: {}]
  %s5 = inlined_call_operand.vmem [shape: bf16[32,48], index: 5, kind: input, shape index: {}]
  %s6 = inlined_call_operand.vmem [shape: bf16[64,64], index: 6, kind: input, shape index: {}]
  %s7 = inlined_call_operand.vmem [shape: bf16[16,48], index: 7, kind: input, shape index: {}]
  %s8 = inlined_call_operand.vmem [shape: bf16[16,24], index: 8, kind: input, shape index: {}]
  %s9 = inlined_call_operand.vmem [shape: bf16[128,128], index: 9, kind: input, shape index: {}]
  %s10 = inlined_call_operand.vmem [shape: f32[32,17], index: 10, kind: input, shape index: {}]
  %s11 = inlined_call_operand.vmem [shape: f32[8,128], index: 11, kind: input, shape index: {}]
  %s12 = inlined_call_operand.vmem [shape: f32[1,1,128], index: 12, kind: output, shape index: {}]
  %s13 = sld [smem:[#allocation0]]
  $region58: #{decoder_forward.3} parent=0
    _
  %s15 = ssub.s32 1, %s13
  %s16 = scalar_select 0, %s15, %s13
  // Predicated region
  $region2: #{decoder_forward.3} parent=0 // pred_check
    _
  $region3: #{decoder_forward.3} parent=0 // pred_check_branch
    %18 = sbr.rel (0) target = $region5
  $region4: #{decoder_forward.3} parent=0 // pred_region
    _
  $region5: #{decoder_forward.3} parent=0 // pred_fallthru
    _
  // Predicated region
  $region6: #{decoder_forward.3} parent=0 // pred_check
    _
  $region7: #{decoder_forward.3} parent=0 // pred_check_branch
    %20 = sbr.rel (0) target = $region9
  $region8: #{decoder_forward.3} parent=0 // pred_region
    _
  $region9: #{decoder_forward.3} parent=0 // pred_fallthru
    _
  // Predicated region
  $region10: #{decoder_forward.3} parent=0 // pred_check
    _
  $region11: #{decoder_forward.3} parent=0 // pred_check_branch
    %22 = sbr.rel (0) target = $region13
  $region12: #{decoder_forward.3} parent=0 // pred_region
    _
  $region13: #{decoder_forward.3} parent=0 // pred_fallthru
    _
  // Predicated region
  $region14: #{decoder_forward.3} parent=0 // pred_check
    _
  $region15: #{decoder_forward.3} parent=0 // pred_check_branch
    %24 = sbr.rel (0) target = $region17
  $region16: #{decoder_forward.3} parent=0 // pred_region
    _
  $region17: #{decoder_forward.3} parent=0 // pred_fallthru
    _
  // Predicated region
  $region18: #{decoder_forward.3} parent=0 // pred_check
    _
  $region19: #{decoder_forward.3} parent=0 // pred_check_branch
    %26 = sbr.rel (0) target = $region21
  $region20: #{decoder_forward.3} parent=0 // pred_region
    _
  $region21: #{decoder_forward.3} parent=0 // pred_fallthru
    _
  // Predicated region
  $region22: #{decoder_forward.3} parent=0 // pred_check
    _
  $region23: #{decoder_forward.3} parent=0 // pred_check_branch
    %28 = sbr.rel (0) target = $region25
  $region24: #{decoder_forward.3} parent=0 // pred_region
    _
  $region25: #{decoder_forward.3} parent=0 // pred_fallthru
    _
  // Predicated region
  $region26: #{decoder_forward.3} parent=0 // pred_check
    _
  $region27: #{decoder_forward.3} parent=0 // pred_check_branch
    %30 = sbr.rel (0) target = $region29
  $region28: #{decoder_forward.3} parent=0 // pred_region
    _
  $region29: #{decoder_forward.3} parent=0 // pred_fallthru
    _
  // Predicated region
  $region30: #{decoder_forward.3} parent=0 // pred_check
    _
  $region31: #{decoder_forward.3} parent=0 // pred_check_branch
    %32 = sbr.rel (0) target = $region33
  $region32: #{decoder_forward.3} parent=0 // pred_region
    _
  $region33: #{decoder_forward.3} parent=0 // pred_fallthru
    _
  // Predicated region
  $region34: #{decoder_forward.3} parent=0 // pred_check
    _
  $region35: #{decoder_forward.3} parent=0 // pred_check_branch
    %34 = sbr.rel (0) target = $region37
  $region36: #{decoder_forward.3} parent=0 // pred_region
    _
  $region37: #{decoder_forward.3} parent=0 // pred_fallthru
    _
  // Predicated region
  $region38: #{decoder_forward.3} parent=0 // pred_check
    _
  $region39: #{decoder_forward.3} parent=0 // pred_check_branch
    %36 = sbr.rel (0) target = $region41
  $region40: #{decoder_forward.3} parent=0 // pred_region
    _
  $region41: #{decoder_forward.3} parent=0 // pred_fallthru
    _
  // Predicated region
  $region42: #{decoder_forward.3} parent=0 // pred_check
    _
  $region43: #{decoder_forward.3} parent=0 // pred_check_branch
    %38 = sbr.rel (0) target = $region45
  $region44: #{decoder_forward.3} parent=0 // pred_region
    _
  $region45: #{decoder_forward.3} parent=0 // pred_fallthru
    _
  // Predicated region
  $region46: #{decoder_forward.3} parent=0 // pred_check
    _
  $region47: #{decoder_forward.3} parent=0 // pred_check_branch
    %40 = sbr.rel (0) target = $region49
  $region48: #{decoder_forward.3} parent=0 // pred_region
    _
  $region49: #{decoder_forward.3} parent=0 // pred_fallthru
    _
  %v42 = vld [vmem:[%s0] sm:$0xf]
  %v43 = vld [vmem:[%s0 + $0x4] sm:$0xf]
  %v44 = vld [vmem:[%s0 + $0x8] sm:$0xf]
  %v45 = vld [vmem:[%s0 + $0xc] sm:$0xf]
  %v46 = vld [vmem:[%s0 + $0x10] sm:$0xf]
  %v47 = vld [vmem:[%s0 + $0x14] sm:$0xf]
  %v48 = vld [vmem:[%s0 + $0x18] sm:$0xf]
  %v49 = vld [vmem:[%s0 + $0x1c] sm:$0xf]
  %v50 = vunpack.c.l.bf16 %v42
  %v51 = vunpack.c.l.bf16 %v43
  %v52 = vunpack.c.l.bf16 %v44
  %v53 = vunpack.c.l.bf16 %v45
  %v54 = vunpack.c.l.bf16 %v46
  %v55 = vunpack.c.l.bf16 %v47
  %v56 = vunpack.c.l.bf16 %v48
  %v57 = vunpack.c.l.bf16 %v49
  %v58 = vld [vmem:[%s11] sm:$0x1]
  %v59 = vld [vmem:[%s11 + $0x1] sm:$0x1]
  %v60 = vld [vmem:[%s11 + $0x2] sm:$0x1]
  %v61 = vld [vmem:[%s11 + $0x3] sm:$0x1]
  %70 = vrot.lane.b32.xlu0 %v50, 113
  %v71 = vpop.permute.xlu0 %70
  %72 = vrot.lane.b32.xlu0 %v51, 113
  %v73 = vpop.permute.xlu0 %72
  %74 = vrot.lane.b32.xlu0 %v52, 113
  %v75 = vpop.permute.xlu0 %74
  %76 = vrot.lane.b32.xlu0 %v53, 113
  %v77 = vpop.permute.xlu0 %76
  %78 = vrot.lane.b32.xlu0 %v54, 113
  %v79 = vpop.permute.xlu0 %78
  %80 = vrot.lane.b32.xlu0 %v55, 113
  %v81 = vpop.permute.xlu0 %80
  %82 = vrot.lane.b32.xlu0 %v56, 113
  %v83 = vpop.permute.xlu0 %82
  %84 = vrot.lane.b32.xlu0 %v57, 113
  %v85 = vpop.permute.xlu0 %84
  %94 = vrot.lane.b32.xlu0 %v50, 1
  %v95 = vpop.permute.xlu0 %94
  %96 = vrot.lane.b32.xlu0 %v51, 1
  %v97 = vpop.permute.xlu0 %96
  %98 = vrot.lane.b32.xlu0 %v52, 1
  %v99 = vpop.permute.xlu0 %98
  %100 = vrot.lane.b32.xlu0 %v53, 1
  %v101 = vpop.permute.xlu0 %100
  %102 = vrot.lane.b32.xlu0 %v54, 1
  %v103 = vpop.permute.xlu0 %102
  %104 = vrot.lane.b32.xlu0 %v55, 1
  %v105 = vpop.permute.xlu0 %104
  %106 = vrot.lane.b32.xlu0 %v56, 1
  %v107 = vpop.permute.xlu0 %106
  %108 = vrot.lane.b32.xlu0 %v57, 1
  %v109 = vpop.permute.xlu0 %108
  %vm118 = vcmask 7168
  %v119 = vsel %vm118, %v71, %v95
  %v120 = vsel %vm118, %v73, %v97
  %v121 = vsel %vm118, %v75, %v99
  %v122 = vsel %vm118, %v77, %v101
  %v123 = vsel %vm118, %v79, %v103
  %v124 = vsel %vm118, %v81, %v105
  %v125 = vsel %vm118, %v83, %v107
  %v126 = vsel %vm118, %v85, %v109
  %v127 = vlaneseq
  %v128 = vshrl.u32 %v127, 7
  %v129 = vsub.s32 0, %v128
  %v130 = vrot.slane %v58, %v129
  %v131 = vmul.f32 %v119, %v130
  %v132 = vmul.f32 %v120, %v130
  %v133 = vmul.f32 %v121, %v130
  %v134 = vmul.f32 %v122, %v130
  %v135 = vmul.f32 %v123, %v130
  %v136 = vmul.f32 %v124, %v130
  %v137 = vmul.f32 %v125, %v130
  %v138 = vmul.f32 %v126, %v130
  %139 = vrot.lane.b32.xlu0 %v50, 127
  %v140 = vpop.permute.xlu0 %139
  %141 = vrot.lane.b32.xlu0 %v51, 127
  %v142 = vpop.permute.xlu0 %141
  %143 = vrot.lane.b32.xlu0 %v52, 127
  %v144 = vpop.permute.xlu0 %143
  %145 = vrot.lane.b32.xlu0 %v53, 127
  %v146 = vpop.permute.xlu0 %145
  %147 = vrot.lane.b32.xlu0 %v54, 127
  %v148 = vpop.permute.xlu0 %147
  %149 = vrot.lane.b32.xlu0 %v55, 127
  %v150 = vpop.permute.xlu0 %149
  %151 = vrot.lane.b32.xlu0 %v56, 127
  %v152 = vpop.permute.xlu0 %151
  %153 = vrot.lane.b32.xlu0 %v57, 127
  %v154 = vpop.permute.xlu0 %153
  %163 = vrot.lane.b32.xlu0 %v50, 15
  %v164 = vpop.permute.xlu0 %163
  %165 = vrot.lane.b32.xlu0 %v51, 15
  %v166 = vpop.permute.xlu0 %165
  %167 = vrot.lane.b32.xlu0 %v52, 15
  %v168 = vpop.permute.xlu0 %167
  %169 = vrot.lane.b32.xlu0 %v53, 15
  %v170 = vpop.permute.xlu0 %169
  %171 = vrot.lane.b32.xlu0 %v54, 15
  %v172 = vpop.permute.xlu0 %171
  %173 = vrot.lane.b32.xlu0 %v55, 15
  %v174 = vpop.permute.xlu0 %173
  %175 = vrot.lane.b32.xlu0 %v56, 15
  %v176 = vpop.permute.xlu0 %175
  %177 = vrot.lane.b32.xlu0 %v57, 15
  %v178 = vpop.permute.xlu0 %177
  %vm187 = vcmask 121856
  %v188 = vsel %vm187, %v140, %v164
  %v189 = vsel %vm187, %v142, %v166
  %v190 = vsel %vm187, %v144, %v168
  %v191 = vsel %vm187, %v146, %v170
  %v192 = vsel %vm187, %v148, %v172
  %v193 = vsel %vm187, %v150, %v174
  %v194 = vsel %vm187, %v152, %v176
  %v195 = vsel %vm187, %v154, %v178
  %v196 = vlaneseq
  %v197 = vshrl.u32 %v196, 7
  %v198 = vsub.s32 0, %v197
  %v199 = vrot.slane %v59, %v198
  %v200 = vmul.f32 %v188, %v199
  %v201 = vmul.f32 %v189, %v199
  %v202 = vmul.f32 %v190, %v199
  %v203 = vmul.f32 %v191, %v199
  %v204 = vmul.f32 %v192, %v199
  %v205 = vmul.f32 %v193, %v199
  %v206 = vmul.f32 %v194, %v199
  %v207 = vmul.f32 %v195, %v199
  %v208 = vpack.c.bf16 %v132, %v131
  %v209 = vpack.c.bf16 %v134, %v133
  %v210 = vpack.c.bf16 %v136, %v135
  %v211 = vpack.c.bf16 %v138, %v137
  %v212 = vpack.c.bf16 %v201, %v200
  %v213 = vpack.c.bf16 %v203, %v202
  %v214 = vpack.c.bf16 %v205, %v204
  %v215 = vpack.c.bf16 %v207, %v206
  %v224 = vunpack.c.l.b16 %v42
  %v225 = vunpack.c.l.b16 %v43
  %v226 = vunpack.c.l.b16 %v44
  %v227 = vunpack.c.l.b16 %v45
  %v228 = vunpack.c.l.b16 %v46
  %v229 = vunpack.c.l.b16 %v47
  %v230 = vunpack.c.l.b16 %v48
  %v231 = vunpack.c.l.b16 %v49
  %v232 = vpack.c.b16 %v225, %v224
  %v233 = vpack.c.b16 %v227, %v226
  %v234 = vpack.c.b16 %v229, %v228
  %v235 = vpack.c.b16 %v231, %v230
  %v240 = vld [vmem:[%s1] sm:$0xff]
  %v241 = vld [vmem:[%s1 + $0x8] sm:$0xff]
  %v242 = vld [vmem:[%s1 + $0x10] sm:$0xff]
  %v243 = vld [vmem:[%s1 + $0x18] sm:$0xff]
  %v244 = vld [vmem:[%s1 + $0x20] sm:$0xff]
  %v245 = vld [vmem:[%s1 + $0x28] sm:$0xff]
  %v246 = vld [vmem:[%s1 + $0x30] sm:$0xff]
  %v247 = vld [vmem:[%s1 + $0x38] sm:$0xff]
  %v256 = vunpack.c.l.b16 %v240
  %v257 = vunpack.c.h.b16 %v240
  %v258 = vunpack.c.l.b16 %v241
  %v259 = vunpack.c.h.b16 %v241
  %v260 = vunpack.c.l.b16 %v242
  %v261 = vunpack.c.h.b16 %v242
  %v262 = vunpack.c.l.b16 %v243
  %v263 = vunpack.c.h.b16 %v243
  %v264 = vunpack.c.l.b16 %v244
  %v265 = vunpack.c.h.b16 %v244
  %v266 = vunpack.c.l.b16 %v245
  %v267 = vunpack.c.h.b16 %v245
  %v268 = vunpack.c.l.b16 %v246
  %v269 = vunpack.c.h.b16 %v246
  %v270 = vunpack.c.l.b16 %v247
  %v271 = vunpack.c.h.b16 %v247
  %v272 = vpack.c.b16 %v258, %v256
  %v273 = vpack.c.b16 %v259, %v257
  %v274 = vpack.c.b16 %v262, %v260
  %v275 = vpack.c.b16 %v263, %v261
  %v276 = vpack.c.b16 %v266, %v264
  %v277 = vpack.c.b16 %v267, %v265
  %v278 = vpack.c.b16 %v270, %v268
  %v279 = vpack.c.b16 %v271, %v269
  %vm284 = vcmask 523264
  %v286 = vsel %vm284, %v273, 0
  %v289 = vsel %vm284, %v275, 0
  %v292 = vsel %vm284, %v277, 0
  %v295 = vsel %vm284, %v279, 0
  %297 = vmatprep.subr.bf16.mxu0 0
  %298 = vmatpush1.bf16.msra.mxu0 %v208
  %299 = vmatprep.subr.bf16.mxu0 0
  %300 = vmatpush1.bf16.msra.mxu0 %v209
  %301 = vmatprep.subr.bf16.mxu0 0
  %302 = vmatpush1.bf16.msra.mxu0 %v210
  %303 = vmatprep.subr.bf16.mxu0 0
  %304 = vmatpush1.bf16.msra.mxu0 %v211
  %305 = vmatprep.subr.bf16.mxu0 0
  %306 = vmatpush1.bf16.msra.mxu0 %v232
  %307 = vmatprep.subr.bf16.mxu0 0
  %308 = vmatpush1.bf16.msra.mxu0 %v233
  %309 = vmatprep.subr.bf16.mxu0 0
  %310 = vmatpush1.bf16.msra.mxu0 %v234
  %311 = vmatprep.subr.bf16.mxu0 0
  %312 = vmatpush1.bf16.msra.mxu0 %v235
  %313 = vmatprep.subr.bf16.mxu0 0
  %314 = vmatpush1.bf16.msra.mxu0 %v212
  %315 = vmatprep.subr.bf16.mxu0 0
  %316 = vmatpush1.bf16.msra.mxu0 %v213
  %317 = vmatprep.subr.bf16.mxu0 0
  %318 = vmatpush1.bf16.msra.mxu0 %v214
  %319 = vmatprep.subr.bf16.mxu0 0
  %320 = vmatpush1.bf16.msra.mxu0 %v215
  %321 = vmatprep.subr.bf16.mxu0 0
  %322 = vmatpush1.bf16.msra.mxu0 0
  %323 = vmatprep.subr.bf16.mxu0 0
  %324 = vmatpush1.bf16.msra.mxu0 0
  %325 = vmatprep.subr.bf16.mxu0 0
  %326 = vmatpush1.bf16.msra.mxu0 0
  %327 = vmatprep.subr.bf16.mxu0 0
  %328 = vmatpush1.bf16.msra.mxu0 0
  %329 = vmatprep.mubr.bf16.mxu0 %v286
  %330 = vmatmul.mubr.bf16.gmra.mrb[0].mxu0 %v272
  %v331 = vpop.f32.mrb[0].mxu0
  %v332 = vadd.f32 0.0, %v331
  %v333 = vpop.f32.mrb[0].mxu0
  %v334 = vpop.f32.mrb[0].mxu0
  %v335 = vadd.f32 0.0, %v334
  %v336 = vpop.f32.mrb[0].mxu0
  %337 = vmatprep.mubr.bf16.mxu0 %v289
  %338 = vmatmul.mubr.bf16.gmra.mrb[0].mxu0 %v274
  %v339 = vpop.f32.mrb[0].mxu0
  %v340 = vadd.f32 0.0, %v339
  %v341 = vpop.f32.mrb[0].mxu0
  %v342 = vpop.f32.mrb[0].mxu0
  %v343 = vadd.f32 0.0, %v342
  %v344 = vpop.f32.mrb[0].mxu0
  %345 = vmatprep.mubr.bf16.mxu0 %v292
  %346 = vmatmul.mubr.bf16.gmra.mrb[0].mxu0 %v276
  %v347 = vpop.f32.mrb[0].mxu0
  %v348 = vadd.f32 0.0, %v347
  %v349 = vpop.f32.mrb[0].mxu0
  %v350 = vpop.f32.mrb[0].mxu0
  %v351 = vadd.f32 0.0, %v350
  %v352 = vpop.f32.mrb[0].mxu0
  %353 = vmatprep.mubr.bf16.mxu0 %v295
  %354 = vmatmul.mubr.bf16.gmra.mrb[0].mxu0 %v278
  %v355 = vpop.f32.mrb[0].mxu0
  %v356 = vadd.f32 0.0, %v355
  %v357 = vpop.f32.mrb[0].mxu0
  %v358 = vpop.f32.mrb[0].mxu0
  %v359 = vadd.f32 0.0, %v358
  %v360 = vpop.f32.mrb[0].mxu0
  %361 = vdwg.mxu0
  %v362 = vpack.c.bf16 %v335, %v332
  %v363 = vpack.c.bf16 %v343, %v340
  %v364 = vpack.c.bf16 %v351, %v348
  %v365 = vpack.c.bf16 %v359, %v356
  %v366 = vld [vmem:[%s3] sm:$0xf]
  %v367 = vld [vmem:[%s3 + $0x4] sm:$0xf]
  %v368 = vld [vmem:[%s3 + $0x8] sm:$0xf]
  %v369 = vld [vmem:[%s3 + $0xc] sm:$0xf]
  %v372 = vunpack.c.l.b16 %v368
  %v373 = vunpack.c.l.b16 %v369
  %v374 = vpack.c.b16 %v373, %v372
  %vm376 = vcmask 130048
  %v378 = vsel %vm376, %v364, 0
  %v381 = vsel %vm376, %v365, 0
  %383 = vmatprep.subr.bf16.mxu0 0
  %384 = vmatpush1.bf16.msra.mxu0 %v374
  %385 = vmatprep.subr.bf16.mxu0 0
  %386 = vmatpush1.bf16.msra.mxu0 0
  %387 = vmatprep.subr.bf16.mxu0 0
  %388 = vmatpush1.bf16.msra.mxu0 0
  %389 = vmatprep.subr.bf16.mxu0 0
  %390 = vmatpush1.bf16.msra.mxu0 0
  %391 = vmatprep.subr.bf16.mxu0 0
  %392 = vmatpush1.bf16.msra.mxu0 0
  %393 = vmatprep.subr.bf16.mxu0 0
  %394 = vmatpush1.bf16.msra.mxu0 0
  %395 = vmatprep.subr.bf16.mxu0 0
  %396 = vmatpush1.bf16.msra.mxu0 0
  %397 = vmatprep.subr.bf16.mxu0 0
  %398 = vmatpush1.bf16.msra.mxu0 0
  %399 = vmatprep.subr.bf16.mxu0 0
  %400 = vmatpush1.bf16.msra.mxu0 0
  %401 = vmatprep.subr.bf16.mxu0 0
  %402 = vmatpush1.bf16.msra.mxu0 0
  %403 = vmatprep.subr.bf16.mxu0 0
  %404 = vmatpush1.bf16.msra.mxu0 0
  %405 = vmatprep.subr.bf16.mxu0 0
  %406 = vmatpush1.bf16.msra.mxu0 0
  %407 = vmatprep.subr.bf16.mxu0 0
  %408 = vmatpush1.bf16.msra.mxu0 0
  %409 = vmatprep.subr.bf16.mxu0 0
  %410 = vmatpush1.bf16.msra.mxu0 0
  %411 = vmatprep.subr.bf16.mxu0 0
  %412 = vmatpush1.bf16.msra.mxu0 0
  %413 = vmatprep.subr.bf16.mxu0 0
  %414 = vmatpush1.bf16.msra.mxu0 0
  %415 = vmatprep.mubr.bf16.mxu0 0
  %416 = vmatmul.mubr.bf16.gmra.mrb[0].mxu0 %v378
  %v417 = vpop.f32.mrb[0].mxu0
  %v418 = vadd.f32 0.0, %v417
  %v419 = vpop.f32.mrb[0].mxu0
  %v420 = vpop.f32.mrb[0].mxu0
  %v421 = vadd.f32 0.0, %v420
  %v422 = vpop.f32.mrb[0].mxu0
  %423 = vmatprep.mubr.bf16.mxu0 0
  %424 = vmatmul.mubr.bf16.gmra.mrb[0].mxu0 %v381
  %v425 = vpop.f32.mrb[0].mxu0
  %v426 = vadd.f32 0.0, %v425
  %v427 = vpop.f32.mrb[0].mxu0
  %v428 = vpop.f32.mrb[0].mxu0
  %v429 = vadd.f32 0.0, %v428
  %v430 = vpop.f32.mrb[0].mxu0
  %431 = vdwg.mxu0
  %v434 = vunpack.c.l.b16 %v366
  %v435 = vunpack.c.l.b16 %v367
  %v436 = vpack.c.b16 %v435, %v434
  %v439 = vsel %vm376, %v362, 0
  %v442 = vsel %vm376, %v363, 0
  %444 = vmatprep.subr.bf16.mxu0 0
  %445 = vmatpush1.bf16.msra.mxu0 %v436
  %446 = vmatprep.subr.bf16.mxu0 0
  %447 = vmatpush1.bf16.msra.mxu0 0
  %448 = vmatprep.subr.bf16.mxu0 0
  %449 = vmatpush1.bf16.msra.mxu0 0
  %450 = vmatprep.subr.bf16.mxu0 0
  %451 = vmatpush1.bf16.msra.mxu0 0
  %452 = vmatprep.subr.bf16.mxu0 0
  %453 = vmatpush1.bf16.msra.mxu0 0
  %454 = vmatprep.subr.bf16.mxu0 0
  %455 = vmatpush1.bf16.msra.mxu0 0
  %456 = vmatprep.subr.bf16.mxu0 0
  %457 = vmatpush1.bf16.msra.mxu0 0
  %458 = vmatprep.subr.bf16.mxu0 0
  %459 = vmatpush1.bf16.msra.mxu0 0
  %460 = vmatprep.subr.bf16.mxu0 0
  %461 = vmatpush1.bf16.msra.mxu0 0
  %462 = vmatprep.subr.bf16.mxu0 0
  %463 = vmatpush1.bf16.msra.mxu0 0
  %464 = vmatprep.subr.bf16.mxu0 0
  %465 = vmatpush1.bf16.msra.mxu0 0
  %466 = vmatprep.subr.bf16.mxu0 0
  %467 = vmatpush1.bf16.msra.mxu0 0
  %468 = vmatprep.subr.bf16.mxu0 0
  %469 = vmatpush1.bf16.msra.mxu0 0
  %470 = vmatprep.subr.bf16.mxu0 0
  %471 = vmatpush1.bf16.msra.mxu0 0
  %472 = vmatprep.subr.bf16.mxu0 0
  %473 = vmatpush1.bf16.msra.mxu0 0
  %474 = vmatprep.subr.bf16.mxu0 0
  %475 = vmatpush1.bf16.msra.mxu0 0
  %476 = vmatprep.mubr.bf16.mxu0 0
  %477 = vmatmul.mubr.bf16.gmra.mrb[0].mxu0 %v439
  %v478 = vpop.f32.mrb[0].mxu0
  %v479 = vadd.f32 %v418, %v478
  %v480 = vpop.f32.mrb[0].mxu0
  %v481 = vpop.f32.mrb[0].mxu0
  %v482 = vadd.f32 %v421, %v481
  %v483 = vpop.f32.mrb[0].mxu0
  %484 = vmatprep.mubr.bf16.mxu0 0
  %485 = vmatmul.mubr.bf16.gmra.mrb[0].mxu0 %v442
  %v486 = vpop.f32.mrb[0].mxu0
  %v487 = vadd.f32 %v426, %v486
  %v488 = vpop.f32.mrb[0].mxu0
  %v489 = vpop.f32.mrb[0].mxu0
  %v490 = vadd.f32 %v429, %v489
  %v491 = vpop.f32.mrb[0].mxu0
  %492 = vdwg.mxu0
  %v493 = vld [vmem:[%s10] sm:$0xff]
  %v494 = vld [vmem:[%s10 + $0x8] sm:$0xff]
  %v495 = vld [vmem:[%s10 + $0x10] sm:$0xff]
  %v496 = vld [vmem:[%s10 + $0x18] sm:$0xff]
  %498 = vset.pattern.permute.xlu0 0
  %499 = vperm.xlu0 %498, %v493
  %v500 = vpop.permute.xlu0 %499
  %503 = vset.pattern.permute.xlu0 0
  %504 = vperm.xlu0 %503, %v494
  %v505 = vpop.permute.xlu0 %504
  %508 = vset.pattern.permute.xlu0 0
  %509 = vperm.xlu0 %508, %v495
  %v510 = vpop.permute.xlu0 %509
  %513 = vset.pattern.permute.xlu0 0
  %514 = vperm.xlu0 %513, %v496
  %v515 = vpop.permute.xlu0 %514
  %v517 = vadd.f32 %v479, %v500
  %v518 = vadd.f32 %v482, %v505
  %v519 = vadd.f32 %v487, %v510
  %v520 = vadd.f32 %v490, %v515
  %525 = vrot.lane.b32.xlu0 %v517, 97
  %v526 = vpop.permute.xlu0 %525
  %527 = vrot.lane.b32.xlu0 %v518, 97
  %v528 = vpop.permute.xlu0 %527
  %529 = vrot.lane.b32.xlu0 %v519, 97
  %v530 = vpop.permute.xlu0 %529
  %531 = vrot.lane.b32.xlu0 %v520, 97
  %v532 = vpop.permute.xlu0 %531
  %537 = vrot.lane.b32.xlu0 %v517, 1
  %v538 = vpop.permute.xlu0 %537
  %539 = vrot.lane.b32.xlu0 %v518, 1
  %v540 = vpop.permute.xlu0 %539
  %541 = vrot.lane.b32.xlu0 %v519, 1
  %v542 = vpop.permute.xlu0 %541
  %543 = vrot.lane.b32.xlu0 %v520, 1
  %v544 = vpop.permute.xlu0 %543
  %v549 = vsel %vm118, %v526, %v538
  %v550 = vsel %vm118, %v528, %v540
  %v551 = vsel %vm118, %v530, %v542
  %v552 = vsel %vm118, %v532, %v544
  %v553 = vlaneseq
  %v554 = vshrl.u32 %v553, 7
  %v555 = vsub.s32 0, %v554
  %v556 = vrot.slane %v60, %v555
  %v557 = vmul.f32 %v549, %v556
  %v558 = vmul.f32 %v550, %v556
  %v559 = vmul.f32 %v551, %v556
  %v560 = vmul.f32 %v552, %v556
  %561 = vrot.lane.b32.xlu0 %v517, 127
  %v562 = vpop.permute.xlu0 %561
  %563 = vrot.lane.b32.xlu0 %v518, 127
  %v564 = vpop.permute.xlu0 %563
  %565 = vrot.lane.b32.xlu0 %v519, 127
  %v566 = vpop.permute.xlu0 %565
  %567 = vrot.lane.b32.xlu0 %v520, 127
  %v568 = vpop.permute.xlu0 %567
  %573 = vrot.lane.b32.xlu0 %v517, 31
  %v574 = vpop.permute.xlu0 %573
  %575 = vrot.lane.b32.xlu0 %v518, 31
  %v576 = vpop.permute.xlu0 %575
  %577 = vrot.lane.b32.xlu0 %v519, 31
  %v578 = vpop.permute.xlu0 %577
  %579 = vrot.lane.b32.xlu0 %v520, 31
  %v580 = vpop.permute.xlu0 %579
  %vm585 = vcmask 252928
  %v586 = vsel %vm585, %v562, %v574
  %v587 = vsel %vm585, %v564, %v576
  %v588 = vsel %vm585, %v566, %v578
  %v589 = vsel %vm585, %v568, %v580
  %v590 = vlaneseq
  %v591 = vshrl.u32 %v590, 7
  %v592 = vsub.s32 0, %v591
  %v593 = vrot.slane %v61, %v592
  %v594 = vmul.f32 %v586, %v593
  %v595 = vmul.f32 %v587, %v593
  %v596 = vmul.f32 %v588, %v593
  %v597 = vmul.f32 %v589, %v593
  %v598 = vpack.c.bf16 %v558, %v557
  %v599 = vpack.c.bf16 %v560, %v559
  %v600 = vpack.c.bf16 %v518, %v517
  %v601 = vpack.c.bf16 %v520, %v519
  %v602 = vpack.c.bf16 %v595, %v594
  %v603 = vpack.c.bf16 %v597, %v596
  %v604 = vld [vmem:[%s2] sm:$0xf]
  %v605 = vld [vmem:[%s2 + $0x4] sm:$0xf]
  %v606 = vld [vmem:[%s2 + $0x8] sm:$0xf]
  %v607 = vld [vmem:[%s2 + $0xc] sm:$0xf]
  %v612 = vunpack.c.l.b16 %v604
  %v613 = vunpack.c.l.b16 %v605
  %v614 = vunpack.c.l.b16 %v606
  %v615 = vunpack.c.l.b16 %v607
  %v616 = vpack.c.b16 %v613, %v612
  %v617 = vpack.c.b16 %v615, %v614
  %vm618 = vcmask 785408
  %v620 = vsel %vm618, %v616, 0
  %v623 = vsel %vm618, %v617, 0
  %625 = vmatprep.subr.bf16.mxu0 0
  %626 = vmatpush1.bf16.msra.mxu0 %v598
  %627 = vmatprep.subr.bf16.mxu0 0
  %628 = vmatpush1.bf16.msra.mxu0 %v599
  %629 = vmatprep.subr.bf16.mxu0 0
  %630 = vmatpush1.bf16.msra.mxu0 %v600
  %631 = vmatprep.subr.bf16.mxu0 0
  %632 = vmatpush1.bf16.msra.mxu0 %v601
  %633 = vmatprep.subr.bf16.mxu0 0
  %634 = vmatpush1.bf16.msra.mxu0 %v602
  %635 = vmatprep.subr.bf16.mxu0 0
  %636 = vmatpush1.bf16.msra.mxu0 %v603
  %637 = vmatprep.subr.bf16.mxu0 0
  %638 = vmatpush1.bf16.msra.mxu0 0
  %639 = vmatprep.subr.bf16.mxu0 0
  %640 = vmatpush1.bf16.msra.mxu0 0
  %641 = vmatprep.subr.bf16.mxu0 0
  %642 = vmatpush1.bf16.msra.mxu0 0
  %643 = vmatprep.subr.bf16.mxu0 0
  %644 = vmatpush1.bf16.msra.mxu0 0
  %645 = vmatprep.subr.bf16.mxu0 0
  %646 = vmatpush1.bf16.msra.mxu0 0
  %647 = vmatprep.subr.bf16.mxu0 0
  %648 = vmatpush1.bf16.msra.mxu0 0
  %649 = vmatprep.subr.bf16.mxu0 0
  %650 = vmatpush1.bf16.msra.mxu0 0
  %651 = vmatprep.subr.bf16.mxu0 0
  %652 = vmatpush1.bf16.msra.mxu0 0
  %653 = vmatprep.subr.bf16.mxu0 0
  %654 = vmatpush1.bf16.msra.mxu0 0
  %655 = vmatprep.subr.bf16.mxu0 0
  %656 = vmatpush1.bf16.msra.mxu0 0
  %657 = vmatprep.mubr.bf16.mxu0 0
  %658 = vmatmul.mubr.bf16.gmra.mrb[0].mxu0 %v620
  %v659 = vpop.f32.mrb[0].mxu0
  %v660 = vadd.f32 0.0, %v659
  %v661 = vpop.f32.mrb[0].mxu0
  %v662 = vpop.f32.mrb[0].mxu0
  %v663 = vadd.f32 0.0, %v662
  %v664 = vpop.f32.mrb[0].mxu0
  %665 = vmatprep.mubr.bf16.mxu0 0
  %666 = vmatmul.mubr.bf16.gmra.mrb[0].mxu0 %v623
  %v667 = vpop.f32.mrb[0].mxu0
  %v668 = vadd.f32 0.0, %v667
  %v669 = vpop.f32.mrb[0].mxu0
  %v670 = vpop.f32.mrb[0].mxu0
  %v671 = vadd.f32 0.0, %v670
  %v672 = vpop.f32.mrb[0].mxu0
  %673 = vdwg.mxu0
  %674 = vset.pattern.permute.xlu0 1
  %675 = vperm.xlu0 %674, %v493
  %v676 = vpop.permute.xlu0 %675
  %678 = vset.pattern.permute.xlu0 1
  %679 = vperm.xlu0 %678, %v494
  %v680 = vpop.permute.xlu0 %679
  %682 = vset.pattern.permute.xlu0 1
  %683 = vperm.xlu0 %682, %v495
  %v684 = vpop.permute.xlu0 %683
  %686 = vset.pattern.permute.xlu0 1
  %687 = vperm.xlu0 %686, %v496
  %v688 = vpop.permute.xlu0 %687
  %v690 = vmul.f32 %v660, %v676
  %v691 = vmul.f32 %v663, %v680
  %v692 = vmul.f32 %v668, %v684
  %v693 = vmul.f32 %v671, %v688
  %694 = vset.pattern.permute.xlu0 2
  %695 = vperm.xlu0 %694, %v493
  %v696 = vpop.permute.xlu0 %695
  %698 = vset.pattern.permute.xlu0 2
  %699 = vperm.xlu0 %698, %v494
  %v700 = vpop.permute.xlu0 %699
  %702 = vset.pattern.permute.xlu0 2
  %703 = vperm.xlu0 %702, %v495
  %v704 = vpop.permute.xlu0 %703
  %706 = vset.pattern.permute.xlu0 2
  %707 = vperm.xlu0 %706, %v496
  %v708 = vpop.permute.xlu0 %707
  %v710 = vadd.f32 %v690, %v696
  %v711 = vadd.f32 %v691, %v700
  %v712 = vadd.f32 %v692, %v704
  %v713 = vadd.f32 %v693, %v708
  %v714 = vmax.f32 %v710, 0.0
  %v715 = vmax.f32 %v711, 0.0
  %v716 = vmax.f32 %v712, 0.0
  %v717 = vmax.f32 %v713, 0.0
  %722 = vrot.lane.b32.xlu0 %v714, 97
  %v723 = vpop.permute.xlu0 %722
  %724 = vrot.lane.b32.xlu0 %v715, 97
  %v725 = vpop.permute.xlu0 %724
  %726 = vrot.lane.b32.xlu0 %v716, 97
  %v727 = vpop.permute.xlu0 %726
  %728 = vrot.lane.b32.xlu0 %v717, 97
  %v729 = vpop.permute.xlu0 %728
  %734 = vrot.lane.b32.xlu0 %v714, 1
  %v735 = vpop.permute.xlu0 %734
  %736 = vrot.lane.b32.xlu0 %v715, 1
  %v737 = vpop.permute.xlu0 %736
  %738 = vrot.lane.b32.xlu0 %v716, 1
  %v739 = vpop.permute.xlu0 %738
  %740 = vrot.lane.b32.xlu0 %v717, 1
  %v741 = vpop.permute.xlu0 %740
  %v746 = vsel %vm118, %v723, %v735
  %v747 = vsel %vm118, %v725, %v737
  %v748 = vsel %vm118, %v727, %v739
  %v749 = vsel %vm118, %v729, %v741
  %v750 = vmul.f32 %v746, %v556
  %v751 = vmul.f32 %v747, %v556
  %v752 = vmul.f32 %v748, %v556
  %v753 = vmul.f32 %v749, %v556
  %754 = vrot.lane.b32.xlu0 %v714, 127
  %v755 = vpop.permute.xlu0 %754
  %756 = vrot.lane.b32.xlu0 %v715, 127
  %v757 = vpop.permute.xlu0 %756
  %758 = vrot.lane.b32.xlu0 %v716, 127
  %v759 = vpop.permute.xlu0 %758
  %760 = vrot.lane.b32.xlu0 %v717, 127
  %v761 = vpop.permute.xlu0 %760
  %766 = vrot.lane.b32.xlu0 %v714, 31
  %v767 = vpop.permute.xlu0 %766
  %768 = vrot.lane.b32.xlu0 %v715, 31
  %v769 = vpop.permute.xlu0 %768
  %770 = vrot.lane.b32.xlu0 %v716, 31
  %v771 = vpop.permute.xlu0 %770
  %772 = vrot.lane.b32.xlu0 %v717, 31
  %v773 = vpop.permute.xlu0 %772
  %v778 = vsel %vm585, %v755, %v767
  %v779 = vsel %vm585, %v757, %v769
  %v780 = vsel %vm585, %v759, %v771
  %v781 = vsel %vm585, %v761, %v773
  %v782 = vmul.f32 %v778, %v593
  %v783 = vmul.f32 %v779, %v593
  %v784 = vmul.f32 %v780, %v593
  %v785 = vmul.f32 %v781, %v593
  %v786 = vpack.c.bf16 %v751, %v750
  %v787 = vpack.c.bf16 %v753, %v752
  %v788 = vpack.c.bf16 %v715, %v714
  %v789 = vpack.c.bf16 %v717, %v716
  %v790 = vpack.c.bf16 %v783, %v782
  %v791 = vpack.c.bf16 %v785, %v784
  %v792 = vld [vmem:[%s2 + $0x10] sm:$0xf]
  %v793 = vld [vmem:[%s2 + $0x14] sm:$0xf]
  %v794 = vld [vmem:[%s2 + $0x18] sm:$0xf]
  %v795 = vld [vmem:[%s2 + $0x1c] sm:$0xf]
  %v800 = vunpack.c.l.b16 %v792
  %v801 = vunpack.c.l.b16 %v793
  %v802 = vunpack.c.l.b16 %v794
  %v803 = vunpack.c.l.b16 %v795
  %v804 = vpack.c.b16 %v801, %v800
  %v805 = vpack.c.b16 %v803, %v802
  %v807 = vsel %vm618, %v804, 0
  %v810 = vsel %vm618, %v805, 0
  %812 = vmatprep.subr.bf16.mxu0 0
  %813 = vmatpush1.bf16.msra.mxu0 %v786
  %814 = vmatprep.subr.bf16.mxu0 0
  %815 = vmatpush1.bf16.msra.mxu0 %v787
  %816 = vmatprep.subr.bf16.mxu0 0
  %817 = vmatpush1.bf16.msra.mxu0 %v788
  %818 = vmatprep.subr.bf16.mxu0 0
  %819 = vmatpush1.bf16.msra.mxu0 %v789
  %820 = vmatprep.subr.bf16.mxu0 0
  %821 = vmatpush1.bf16.msra.mxu0 %v790
  %822 = vmatprep.subr.bf16.mxu0 0
  %823 = vmatpush1.bf16.msra.mxu0 %v791
  %824 = vmatprep.subr.bf16.mxu0 0
  %825 = vmatpush1.bf16.msra.mxu0 0
  %826 = vmatprep.subr.bf16.mxu0 0
  %827 = vmatpush1.bf16.msra.mxu0 0
  %828 = vmatprep.subr.bf16.mxu0 0
  %829 = vmatpush1.bf16.msra.mxu0 0
  %830 = vmatprep.subr.bf16.mxu0 0
  %831 = vmatpush1.bf16.msra.mxu0 0
  %832 = vmatprep.subr.bf16.mxu0 0
  %833 = vmatpush1.bf16.msra.mxu0 0
  %834 = vmatprep.subr.bf16.mxu0 0
  %835 = vmatpush1.bf16.msra.mxu0 0
  %836 = vmatprep.subr.bf16.mxu0 0
  %837 = vmatpush1.bf16.msra.mxu0 0
  %838 = vmatprep.subr.bf16.mxu0 0
  %839 = vmatpush1.bf16.msra.mxu0 0
  %840 = vmatprep.subr.bf16.mxu0 0
  %841 = vmatpush1.bf16.msra.mxu0 0
  %842 = vmatprep.subr.bf16.mxu0 0
  %843 = vmatpush1.bf16.msra.mxu0 0
  %844 = vmatprep.mubr.bf16.mxu0 0
  %845 = vmatmul.mubr.bf16.gmra.mrb[0].mxu0 %v807
  %v846 = vpop.f32.mrb[0].mxu0
  %v847 = vadd.f32 0.0, %v846
  %v848 = vpop.f32.mrb[0].mxu0
  %v849 = vpop.f32.mrb[0].mxu0
  %v850 = vadd.f32 0.0, %v849
  %v851 = vpop.f32.mrb[0].mxu0
  %852 = vmatprep.mubr.bf16.mxu0 0
  %853 = vmatmul.mubr.bf16.gmra.mrb[0].mxu0 %v810
  %v854 = vpop.f32.mrb[0].mxu0
  %v855 = vadd.f32 0.0, %v854
  %v856 = vpop.f32.mrb[0].mxu0
  %v857 = vpop.f32.mrb[0].mxu0
  %v858 = vadd.f32 0.0, %v857
  %v859 = vpop.f32.mrb[0].mxu0
  %860 = vdwg.mxu0
  %861 = vset.pattern.permute.xlu0 3
  %862 = vperm.xlu0 %861, %v493
  %v863 = vpop.permute.xlu0 %862
  %865 = vset.pattern.permute.xlu0 3
  %866 = vperm.xlu0 %865, %v494
  %v867 = vpop.permute.xlu0 %866
  %869 = vset.pattern.permute.xlu0 3
  %870 = vperm.xlu0 %869, %v495
  %v871 = vpop.permute.xlu0 %870
  %873 = vset.pattern.permute.xlu0 3
  %874 = vperm.xlu0 %873, %v496
  %v875 = vpop.permute.xlu0 %874
  %v877 = vmul.f32 %v847, %v863
  %v878 = vmul.f32 %v850, %v867
  %v879 = vmul.f32 %v855, %v871
  %v880 = vmul.f32 %v858, %v875
  %881 = vset.pattern.permute.xlu0 4
  %882 = vperm.xlu0 %881, %v493
  %v883 = vpop.permute.xlu0 %882
  %885 = vset.pattern.permute.xlu0 4
  %886 = vperm.xlu0 %885, %v494
  %v887 = vpop.permute.xlu0 %886
  %889 = vset.pattern.permute.xlu0 4
  %890 = vperm.xlu0 %889, %v495
  %v891 = vpop.permute.xlu0 %890
  %893 = vset.pattern.permute.xlu0 4
  %894 = vperm.xlu0 %893, %v496
  %v895 = vpop.permute.xlu0 %894
  %v897 = vadd.f32 %v877, %v883
  %v898 = vadd.f32 %v878, %v887
  %v899 = vadd.f32 %v879, %v891
  %v900 = vadd.f32 %v880, %v895
  %v901 = vadd.f32 %v897, %v517
  %v902 = vadd.f32 %v898, %v518
  %v903 = vadd.f32 %v899, %v519
  %v904 = vadd.f32 %v900, %v520
  %v905 = vmax.f32 %v901, 0.0
  %v906 = vmax.f32 %v902, 0.0
  %v907 = vmax.f32 %v903, 0.0
  %v908 = vmax.f32 %v904, 0.0
  %v909 = vld [vmem:[%s11 + $0x4] sm:$0x1]
  %v910 = vld [vmem:[%s11 + $0x5] sm:$0x1]
  %915 = vrot.lane.b32.xlu0 %v905, 97
  %v916 = vpop.permute.xlu0 %915
  %917 = vrot.lane.b32.xlu0 %v906, 97
  %v918 = vpop.permute.xlu0 %917
  %919 = vrot.lane.b32.xlu0 %v907, 97
  %v920 = vpop.permute.xlu0 %919
  %921 = vrot.lane.b32.xlu0 %v908, 97
  %v922 = vpop.permute.xlu0 %921
  %927 = vrot.lane.b32.xlu0 %v905, 1
  %v928 = vpop.permute.xlu0 %927
  %929 = vrot.lane.b32.xlu0 %v906, 1
  %v930 = vpop.permute.xlu0 %929
  %931 = vrot.lane.b32.xlu0 %v907, 1
  %v932 = vpop.permute.xlu0 %931
  %933 = vrot.lane.b32.xlu0 %v908, 1
  %v934 = vpop.permute.xlu0 %933
  %v939 = vsel %vm118, %v916, %v928
  %v940 = vsel %vm118, %v918, %v930
  %v941 = vsel %vm118, %v920, %v932
  %v942 = vsel %vm118, %v922, %v934
  %v943 = vmul.f32 %v939, %v556
  %v944 = vmul.f32 %v940, %v556
  %v945 = vmul.f32 %v941, %v556
  %v946 = vmul.f32 %v942, %v556
  %947 = vrot.lane.b32.xlu0 %v905, 127
  %v948 = vpop.permute.xlu0 %947
  %949 = vrot.lane.b32.xlu0 %v906, 127
  %v950 = vpop.permute.xlu0 %949
  %951 = vrot.lane.b32.xlu0 %v907, 127
  %v952 = vpop.permute.xlu0 %951
  %953 = vrot.lane.b32.xlu0 %v908, 127
  %v954 = vpop.permute.xlu0 %953
  %959 = vrot.lane.b32.xlu0 %v905, 31
  %v960 = vpop.permute.xlu0 %959
  %961 = vrot.lane.b32.xlu0 %v906, 31
  %v962 = vpop.permute.xlu0 %961
  %963 = vrot.lane.b32.xlu0 %v907, 31
  %v964 = vpop.permute.xlu0 %963
  %965 = vrot.lane.b32.xlu0 %v908, 31
  %v966 = vpop.permute.xlu0 %965
  %v971 = vsel %vm585, %v948, %v960
  %v972 = vsel %vm585, %v950, %v962
  %v973 = vsel %vm585, %v952, %v964
  %v974 = vsel %vm585, %v954, %v966
  %v975 = vmul.f32 %v971, %v593
  %v976 = vmul.f32 %v972, %v593
  %v977 = vmul.f32 %v973, %v593
  %v978 = vmul.f32 %v974, %v593
  %v979 = vpack.c.bf16 %v944, %v943
  %v980 = vpack.c.bf16 %v946, %v945
  %v981 = vpack.c.bf16 %v906, %v905
  %v982 = vpack.c.bf16 %v908, %v907
  %v983 = vpack.c.bf16 %v976, %v975
  %v984 = vpack.c.bf16 %v978, %v977
  %v985 = vld [vmem:[%s4] sm:$0xf]
  %v986 = vld [vmem:[%s4 + $0x4] sm:$0xf]
  %v987 = vld [vmem:[%s4 + $0x8] sm:$0xf]
  %v988 = vld [vmem:[%s4 + $0xc] sm:$0xf]
  %v993 = vunpack.c.l.b16 %v985
  %v994 = vunpack.c.l.b16 %v986
  %v995 = vunpack.c.l.b16 %v987
  %v996 = vunpack.c.l.b16 %v988
  %v997 = vpack.c.b16 %v994, %v993
  %v998 = vpack.c.b16 %v996, %v995
  %v1000 = vsel %vm618, %v997, 0
  %v1003 = vsel %vm618, %v998, 0
  %1005 = vmatprep.subr.bf16.mxu0 0
  %1006 = vmatpush1.bf16.msra.mxu0 %v979
  %1007 = vmatprep.subr.bf16.mxu0 0
  %1008 = vmatpush1.bf16.msra.mxu0 %v980
  %1009 = vmatprep.subr.bf16.mxu0 0
  %1010 = vmatpush1.bf16.msra.mxu0 %v981
  %1011 = vmatprep.subr.bf16.mxu0 0
  %1012 = vmatpush1.bf16.msra.mxu0 %v982
  %1013 = vmatprep.subr.bf16.mxu0 0
  %1014 = vmatpush1.bf16.msra.mxu0 %v983
  %1015 = vmatprep.subr.bf16.mxu0 0
  %1016 = vmatpush1.bf16.msra.mxu0 %v984
  %1017 = vmatprep.subr.bf16.mxu0 0
  %1018 = vmatpush1.bf16.msra.mxu0 0
  %1019 = vmatprep.subr.bf16.mxu0 0
  %1020 = vmatpush1.bf16.msra.mxu0 0
  %1021 = vmatprep.subr.bf16.mxu0 0
  %1022 = vmatpush1.bf16.msra.mxu0 0
  %1023 = vmatprep.subr.bf16.mxu0 0
  %1024 = vmatpush1.bf16.msra.mxu0 0
  %1025 = vmatprep.subr.bf16.mxu0 0
  %1026 = vmatpush1.bf16.msra.mxu0 0
  %1027 = vmatprep.subr.bf16.mxu0 0
  %1028 = vmatpush1.bf16.msra.mxu0 0
  %1029 = vmatprep.subr.bf16.mxu0 0
  %1030 = vmatpush1.bf16.msra.mxu0 0
  %1031 = vmatprep.subr.bf16.mxu0 0
  %1032 = vmatpush1.bf16.msra.mxu0 0
  %1033 = vmatprep.subr.bf16.mxu0 0
  %1034 = vmatpush1.bf16.msra.mxu0 0
  %1035 = vmatprep.subr.bf16.mxu0 0
  %1036 = vmatpush1.bf16.msra.mxu0 0
  %1037 = vmatprep.mubr.bf16.mxu0 0
  %1038 = vmatmul.mubr.bf16.gmra.mrb[0].mxu0 %v1000
  %v1039 = vpop.f32.mrb[0].mxu0
  %v1040 = vadd.f32 0.0, %v1039
  %v1041 = vpop.f32.mrb[0].mxu0
  %v1042 = vpop.f32.mrb[0].mxu0
  %v1043 = vadd.f32 0.0, %v1042
  %v1044 = vpop.f32.mrb[0].mxu0
  %1045 = vmatprep.mubr.bf16.mxu0 0
  %1046 = vmatmul.mubr.bf16.gmra.mrb[0].mxu0 %v1003
  %v1047 = vpop.f32.mrb[0].mxu0
  %v1048 = vadd.f32 0.0, %v1047
  %v1049 = vpop.f32.mrb[0].mxu0
  %v1050 = vpop.f32.mrb[0].mxu0
  %v1051 = vadd.f32 0.0, %v1050
  %v1052 = vpop.f32.mrb[0].mxu0
  %1053 = vdwg.mxu0
  %v1054 = vpack.c.bf16 %v1043, %v1040
  %v1055 = vpack.c.bf16 %v1051, %v1048
  %v1056 = vld [vmem:[%s6] sm:$0xf]
  %v1057 = vld [vmem:[%s6 + $0x4] sm:$0xf]
  %v1058 = vld [vmem:[%s6 + $0x8] sm:$0xf]
  %v1059 = vld [vmem:[%s6 + $0xc] sm:$0xf]
  %v1060 = vld [vmem:[%s6 + $0x10] sm:$0xf]
  %v1061 = vld [vmem:[%s6 + $0x14] sm:$0xf]
  %v1062 = vld [vmem:[%s6 + $0x18] sm:$0xf]
  %v1063 = vld [vmem:[%s6 + $0x1c] sm:$0xf]
  %v1068 = vunpack.c.l.b16 %v1060
  %v1069 = vunpack.c.l.b16 %v1061
  %v1070 = vunpack.c.l.b16 %v1062
  %v1071 = vunpack.c.l.b16 %v1063
  %v1072 = vpack.c.b16 %v1069, %v1068
  %v1073 = vpack.c.b16 %v1071, %v1070
  %vm1076 = vcmask 261120
  %v1078 = vsel %vm1076, %v1055, 0
  %1080 = vmatprep.subr.bf16.mxu0 0
  %1081 = vmatpush1.bf16.msra.mxu0 %v1072
  %1082 = vmatprep.subr.bf16.mxu0 0
  %1083 = vmatpush1.bf16.msra.mxu0 %v1073
  %1084 = vmatprep.subr.bf16.mxu0 0
  %1085 = vmatpush1.bf16.msra.mxu0 0
  %1086 = vmatprep.subr.bf16.mxu0 0
  %1087 = vmatpush1.bf16.msra.mxu0 0
  %1088 = vmatprep.subr.bf16.mxu0 0
  %1089 = vmatpush1.bf16.msra.mxu0 0
  %1090 = vmatprep.subr.bf16.mxu0 0
  %1091 = vmatpush1.bf16.msra.mxu0 0
  %1092 = vmatprep.subr.bf16.mxu0 0
  %1093 = vmatpush1.bf16.msra.mxu0 0
  %1094 = vmatprep.subr.bf16.mxu0 0
  %1095 = vmatpush1.bf16.msra.mxu0 0
  %1096 = vmatprep.subr.bf16.mxu0 0
  %1097 = vmatpush1.bf16.msra.mxu0 0
  %1098 = vmatprep.subr.bf16.mxu0 0
  %1099 = vmatpush1.bf16.msra.mxu0 0
  %1100 = vmatprep.subr.bf16.mxu0 0
  %1101 = vmatpush1.bf16.msra.mxu0 0
  %1102 = vmatprep.subr.bf16.mxu0 0
  %1103 = vmatpush1.bf16.msra.mxu0 0
  %1104 = vmatprep.subr.bf16.mxu0 0
  %1105 = vmatpush1.bf16.msra.mxu0 0
  %1106 = vmatprep.subr.bf16.mxu0 0
  %1107 = vmatpush1.bf16.msra.mxu0 0
  %1108 = vmatprep.subr.bf16.mxu0 0
  %1109 = vmatpush1.bf16.msra.mxu0 0
  %1110 = vmatprep.subr.bf16.mxu0 0
  %1111 = vmatpush1.bf16.msra.mxu0 0
  %1112 = vmatprep.mubr.bf16.mxu0 0
  %1113 = vmatmul.mubr.bf16.gmra.mrb[0].mxu0 %v1078
  %v1114 = vpop.f32.mrb[0].mxu0
  %v1115 = vadd.f32 0.0, %v1114
  %v1116 = vpop.f32.mrb[0].mxu0
  %v1117 = vpop.f32.mrb[0].mxu0
  %v1118 = vadd.f32 0.0, %v1117
  %v1119 = vpop.f32.mrb[0].mxu0
  %1120 = vdwg.mxu0
  %v1125 = vunpack.c.l.b16 %v1056
  %v1126 = vunpack.c.l.b16 %v1057
  %v1127 = vunpack.c.l.b16 %v1058
  %v1128 = vunpack.c.l.b16 %v1059
  %v1129 = vpack.c.b16 %v1126, %v1125
  %v1130 = vpack.c.b16 %v1128, %v1127
  %v1134 = vsel %vm1076, %v1054, 0
  %1136 = vmatprep.subr.bf16.mxu0 0
  %1137 = vmatpush1.bf16.msra.mxu0 %v1129
  %1138 = vmatprep.subr.bf16.mxu0 0
  %1139 = vmatpush1.bf16.msra.mxu0 %v1130
  %1140 = vmatprep.subr.bf16.mxu0 0
  %1141 = vmatpush1.bf16.msra.mxu0 0
  %1142 = vmatprep.subr.bf16.mxu0 0
  %1143 = vmatpush1.bf16.msra.mxu0 0
  %1144 = vmatprep.subr.bf16.mxu0 0
  %1145 = vmatpush1.bf16.msra.mxu0 0
  %1146 = vmatprep.subr.bf16.mxu0 0
  %1147 = vmatpush1.bf16.msra.mxu0 0
  %1148 = vmatprep.subr.bf16.mxu0 0
  %1149 = vmatpush1.bf16.msra.mxu0 0
  %1150 = vmatprep.subr.bf16.mxu0 0
  %1151 = vmatpush1.bf16.msra.mxu0 0
  %1152 = vmatprep.subr.bf16.mxu0 0
  %1153 = vmatpush1.bf16.msra.mxu0 0
  %1154 = vmatprep.subr.bf16.mxu0 0
  %1155 = vmatpush1.bf16.msra.mxu0 0
  %1156 = vmatprep.subr.bf16.mxu0 0
  %1157 = vmatpush1.bf16.msra.mxu0 0
  %1158 = vmatprep.subr.bf16.mxu0 0
  %1159 = vmatpush1.bf16.msra.mxu0 0
  %1160 = vmatprep.subr.bf16.mxu0 0
  %1161 = vmatpush1.bf16.msra.mxu0 0
  %1162 = vmatprep.subr.bf16.mxu0 0
  %1163 = vmatpush1.bf16.msra.mxu0 0
  %1164 = vmatprep.subr.bf16.mxu0 0
  %1165 = vmatpush1.bf16.msra.mxu0 0
  %1166 = vmatprep.subr.bf16.mxu0 0
  %1167 = vmatpush1.bf16.msra.mxu0 0
  %1168 = vmatprep.mubr.bf16.mxu0 0
  %1169 = vmatmul.mubr.bf16.gmra.mrb[0].mxu0 %v1134
  %v1170 = vpop.f32.mrb[0].mxu0
  %v1171 = vadd.f32 %v1115, %v1170
  %v1172 = vpop.f32.mrb[0].mxu0
  %v1173 = vpop.f32.mrb[0].mxu0
  %v1174 = vadd.f32 %v1118, %v1173
  %v1175 = vpop.f32.mrb[0].mxu0
  %1176 = vdwg.mxu0
  %v1177 = vld [vmem:[%s10] sm:$0xff]
  %v1178 = vld [vmem:[%s10 + $0x8] sm:$0xff]
  %1180 = vset.pattern.permute.xlu0 5
  %1181 = vperm.xlu0 %1180, %v1177
  %v1182 = vpop.permute.xlu0 %1181
  %1185 = vset.pattern.permute.xlu0 5
  %1186 = vperm.xlu0 %1185, %v1178
  %v1187 = vpop.permute.xlu0 %1186
  %v1189 = vadd.f32 %v1171, %v1182
  %v1190 = vadd.f32 %v1174, %v1187
  %1193 = vrot.lane.b32.xlu0 %v1189, 65
  %v1194 = vpop.permute.xlu0 %1193
  %1195 = vrot.lane.b32.xlu0 %v1190, 65
  %v1196 = vpop.permute.xlu0 %1195
  %1199 = vrot.lane.b32.xlu0 %v1189, 1
  %v1200 = vpop.permute.xlu0 %1199
  %1201 = vrot.lane.b32.xlu0 %v1190, 1
  %v1202 = vpop.permute.xlu0 %1201
  %v1205 = vsel %vm118, %v1194, %v1200
  %v1206 = vsel %vm118, %v1196, %v1202
  %v1207 = vlaneseq
  %v1208 = vshrl.u32 %v1207, 7
  %v1209 = vsub.s32 0, %v1208
  %v1210 = vrot.slane %v909, %v1209
  %v1211 = vmul.f32 %v1205, %v1210
  %v1212 = vmul.f32 %v1206, %v1210
  %1213 = vrot.lane.b32.xlu0 %v1189, 127
  %v1214 = vpop.permute.xlu0 %1213
  %1215 = vrot.lane.b32.xlu0 %v1190, 127
  %v1216 = vpop.permute.xlu0 %1215
  %1219 = vrot.lane.b32.xlu0 %v1189, 63
  %v1220 = vpop.permute.xlu0 %1219
  %1221 = vrot.lane.b32.xlu0 %v1190, 63
  %v1222 = vpop.permute.xlu0 %1221
  %vm1225 = vcmask 515072
  %v1226 = vsel %vm1225, %v1214, %v1220
  %v1227 = vsel %vm1225, %v1216, %v1222
  %v1228 = vlaneseq
  %v1229 = vshrl.u32 %v1228, 7
  %v1230 = vsub.s32 0, %v1229
  %v1231 = vrot.slane %v910, %v1230
  %v1232 = vmul.f32 %v1226, %v1231
  %v1233 = vmul.f32 %v1227, %v1231
  %v1234 = vpack.c.bf16 %v1212, %v1211
  %v1235 = vpack.c.bf16 %v1190, %v1189
  %v1236 = vpack.c.bf16 %v1233, %v1232
  %v1237 = vld [vmem:[%s5] sm:$0xf]
  %v1238 = vld [vmem:[%s5 + $0x4] sm:$0xf]
  %v1241 = vunpack.c.l.b16 %v1237
  %v1242 = vunpack.c.l.b16 %v1238
  %v1243 = vpack.c.b16 %v1242, %v1241
  %vm1244 = vcmask 392192
  %v1246 = vsel %vm1244, %v1243, 0
  %1248 = vmatprep.subr.bf16.mxu0 0
  %1249 = vmatpush1.bf16.msra.mxu0 %v1234
  %1250 = vmatprep.subr.bf16.mxu0 0
  %1251 = vmatpush1.bf16.msra.mxu0 %v1235
  %1252 = vmatprep.subr.bf16.mxu0 0
  %1253 = vmatpush1.bf16.msra.mxu0 %v1236
  %1254 = vmatprep.subr.bf16.mxu0 0
  %1255 = vmatpush1.bf16.msra.mxu0 0
  %1256 = vmatprep.subr.bf16.mxu0 0
  %1257 = vmatpush1.bf16.msra.mxu0 0
  %1258 = vmatprep.subr.bf16.mxu0 0
  %1259 = vmatpush1.bf16.msra.mxu0 0
  %1260 = vmatprep.subr.bf16.mxu0 0
  %1261 = vmatpush1.bf16.msra.mxu0 0
  %1262 = vmatprep.subr.bf16.mxu0 0
  %1263 = vmatpush1.bf16.msra.mxu0 0
  %1264 = vmatprep.subr.bf16.mxu0 0
  %1265 = vmatpush1.bf16.msra.mxu0 0
  %1266 = vmatprep.subr.bf16.mxu0 0
  %1267 = vmatpush1.bf16.msra.mxu0 0
  %1268 = vmatprep.subr.bf16.mxu0 0
  %1269 = vmatpush1.bf16.msra.mxu0 0
  %1270 = vmatprep.subr.bf16.mxu0 0
  %1271 = vmatpush1.bf16.msra.mxu0 0
  %1272 = vmatprep.subr.bf16.mxu0 0
  %1273 = vmatpush1.bf16.msra.mxu0 0
  %1274 = vmatprep.subr.bf16.mxu0 0
  %1275 = vmatpush1.bf16.msra.mxu0 0
  %1276 = vmatprep.subr.bf16.mxu0 0
  %1277 = vmatpush1.bf16.msra.mxu0 0
  %1278 = vmatprep.subr.bf16.mxu0 0
  %1279 = vmatpush1.bf16.msra.mxu0 0
  %1280 = vmatprep.mubr.bf16.mxu0 0
  %1281 = vmatmul.mubr.bf16.gmra.mrb[0].mxu0 %v1246
  %v1282 = vpop.f32.mrb[0].mxu0
  %v1283 = vadd.f32 0.0, %v1282
  %v1284 = vpop.f32.mrb[0].mxu0
  %v1285 = vpop.f32.mrb[0].mxu0
  %v1286 = vadd.f32 0.0, %v1285
  %v1287 = vpop.f32.mrb[0].mxu0
  %1288 = vdwg.mxu0
  %1289 = vset.pattern.permute.xlu0 6
  %1290 = vperm.xlu0 %1289, %v1177
  %v1291 = vpop.permute.xlu0 %1290
  %1293 = vset.pattern.permute.xlu0 6
  %1294 = vperm.xlu0 %1293, %v1178
  %v1295 = vpop.permute.xlu0 %1294
  %v1297 = vmul.f32 %v1283, %v1291
  %v1298 = vmul.f32 %v1286, %v1295
  %1299 = vset.pattern.permute.xlu0 7
  %1300 = vperm.xlu0 %1299, %v1177
  %v1301 = vpop.permute.xlu0 %1300
  %1303 = vset.pattern.permute.xlu0 7
  %1304 = vperm.xlu0 %1303, %v1178
  %v1305 = vpop.permute.xlu0 %1304
  %v1307 = vadd.f32 %v1297, %v1301
  %v1308 = vadd.f32 %v1298, %v1305
  %v1309 = vmax.f32 %v1307, 0.0
  %v1310 = vmax.f32 %v1308, 0.0
  %1313 = vrot.lane.b32.xlu0 %v1309, 65
  %v1314 = vpop.permute.xlu0 %1313
  %1315 = vrot.lane.b32.xlu0 %v1310, 65
  %v1316 = vpop.permute.xlu0 %1315
  %1319 = vrot.lane.b32.xlu0 %v1309, 1
  %v1320 = vpop.permute.xlu0 %1319
  %1321 = vrot.lane.b32.xlu0 %v1310, 1
  %v1322 = vpop.permute.xlu0 %1321
  %v1325 = vsel %vm118, %v1314, %v1320
  %v1326 = vsel %vm118, %v1316, %v1322
  %v1327 = vmul.f32 %v1325, %v1210
  %v1328 = vmul.f32 %v1326, %v1210
  %1329 = vrot.lane.b32.xlu0 %v1309, 127
  %v1330 = vpop.permute.xlu0 %1329
  %1331 = vrot.lane.b32.xlu0 %v1310, 127
  %v1332 = vpop.permute.xlu0 %1331
  %1335 = vrot.lane.b32.xlu0 %v1309, 63
  %v1336 = vpop.permute.xlu0 %1335
  %1337 = vrot.lane.b32.xlu0 %v1310, 63
  %v1338 = vpop.permute.xlu0 %1337
  %v1341 = vsel %vm1225, %v1330, %v1336
  %v1342 = vsel %vm1225, %v1332, %v1338
  %v1343 = vmul.f32 %v1341, %v1231
  %v1344 = vmul.f32 %v1342, %v1231
  %v1345 = vpack.c.bf16 %v1328, %v1327
  %v1346 = vpack.c.bf16 %v1310, %v1309
  %v1347 = vpack.c.bf16 %v1344, %v1343
  %v1348 = vld [vmem:[%s5 + $0x8] sm:$0xf]
  %v1349 = vld [vmem:[%s5 + $0xc] sm:$0xf]
  %v1352 = vunpack.c.l.b16 %v1348
  %v1353 = vunpack.c.l.b16 %v1349
  %v1354 = vpack.c.b16 %v1353, %v1352
  %v1356 = vsel %vm1244, %v1354, 0
  %1358 = vmatprep.subr.bf16.mxu0 0
  %1359 = vmatpush1.bf16.msra.mxu0 %v1345
  %1360 = vmatprep.subr.bf16.mxu0 0
  %1361 = vmatpush1.bf16.msra.mxu0 %v1346
  %1362 = vmatprep.subr.bf16.mxu0 0
  %1363 = vmatpush1.bf16.msra.mxu0 %v1347
  %1364 = vmatprep.subr.bf16.mxu0 0
  %1365 = vmatpush1.bf16.msra.mxu0 0
  %1366 = vmatprep.subr.bf16.mxu0 0
  %1367 = vmatpush1.bf16.msra.mxu0 0
  %1368 = vmatprep.subr.bf16.mxu0 0
  %1369 = vmatpush1.bf16.msra.mxu0 0
  %1370 = vmatprep.subr.bf16.mxu0 0
  %1371 = vmatpush1.bf16.msra.mxu0 0
  %1372 = vmatprep.subr.bf16.mxu0 0
  %1373 = vmatpush1.bf16.msra.mxu0 0
  %1374 = vmatprep.subr.bf16.mxu0 0
  %1375 = vmatpush1.bf16.msra.mxu0 0
  %1376 = vmatprep.subr.bf16.mxu0 0
  %1377 = vmatpush1.bf16.msra.mxu0 0
  %1378 = vmatprep.subr.bf16.mxu0 0
  %1379 = vmatpush1.bf16.msra.mxu0 0
  %1380 = vmatprep.subr.bf16.mxu0 0
  %1381 = vmatpush1.bf16.msra.mxu0 0
  %1382 = vmatprep.subr.bf16.mxu0 0
  %1383 = vmatpush1.bf16.msra.mxu0 0
  %1384 = vmatprep.subr.bf16.mxu0 0
  %1385 = vmatpush1.bf16.msra.mxu0 0
  %1386 = vmatprep.subr.bf16.mxu0 0
  %1387 = vmatpush1.bf16.msra.mxu0 0
  %1388 = vmatprep.subr.bf16.mxu0 0
  %1389 = vmatpush1.bf16.msra.mxu0 0
  %1390 = vmatprep.mubr.bf16.mxu0 0
  %1391 = vmatmul.mubr.bf16.gmra.mrb[0].mxu0 %v1356
  %v1392 = vpop.f32.mrb[0].mxu0
  %v1393 = vadd.f32 0.0, %v1392
  %v1394 = vpop.f32.mrb[0].mxu0
  %v1395 = vpop.f32.mrb[0].mxu0
  %v1396 = vadd.f32 0.0, %v1395
  %v1397 = vpop.f32.mrb[0].mxu0
  %1398 = vdwg.mxu0
  %1399 = vset.pattern.permute.xlu0 8
  %1400 = vperm.xlu0 %1399, %v1177
  %v1401 = vpop.permute.xlu0 %1400
  %1403 = vset.pattern.permute.xlu0 8
  %1404 = vperm.xlu0 %1403, %v1178
  %v1405 = vpop.permute.xlu0 %1404
  %v1407 = vmul.f32 %v1393, %v1401
  %v1408 = vmul.f32 %v1396, %v1405
  %1409 = vset.pattern.permute.xlu0 9
  %1410 = vperm.xlu0 %1409, %v1177
  %v1411 = vpop.permute.xlu0 %1410
  %1413 = vset.pattern.permute.xlu0 9
  %1414 = vperm.xlu0 %1413, %v1178
  %v1415 = vpop.permute.xlu0 %1414
  %v1417 = vadd.f32 %v1407, %v1411
  %v1418 = vadd.f32 %v1408, %v1415
  %v1419 = vadd.f32 %v1417, %v1189
  %v1420 = vadd.f32 %v1418, %v1190
  %v1421 = vmax.f32 %v1419, 0.0
  %v1422 = vmax.f32 %v1420, 0.0
  %v1423 = vld [vmem:[%s11 + $0x6] sm:$0x1]
  %v1424 = vld [vmem:[%s11 + $0x7] sm:$0x1]
  %1427 = vrot.lane.b32.xlu0 %v1421, 65
  %v1428 = vpop.permute.xlu0 %1427
  %1429 = vrot.lane.b32.xlu0 %v1422, 65
  %v1430 = vpop.permute.xlu0 %1429
  %1433 = vrot.lane.b32.xlu0 %v1421, 1
  %v1434 = vpop.permute.xlu0 %1433
  %1435 = vrot.lane.b32.xlu0 %v1422, 1
  %v1436 = vpop.permute.xlu0 %1435
  %v1439 = vsel %vm118, %v1428, %v1434
  %v1440 = vsel %vm118, %v1430, %v1436
  %v1441 = vmul.f32 %v1439, %v1210
  %v1442 = vmul.f32 %v1440, %v1210
  %1443 = vrot.lane.b32.xlu0 %v1421, 127
  %v1444 = vpop.permute.xlu0 %1443
  %1445 = vrot.lane.b32.xlu0 %v1422, 127
  %v1446 = vpop.permute.xlu0 %1445
  %1449 = vrot.lane.b32.xlu0 %v1421, 63
  %v1450 = vpop.permute.xlu0 %1449
  %1451 = vrot.lane.b32.xlu0 %v1422, 63
  %v1452 = vpop.permute.xlu0 %1451
  %v1455 = vsel %vm1225, %v1444, %v1450
  %v1456 = vsel %vm1225, %v1446, %v1452
  %v1457 = vmul.f32 %v1455, %v1231
  %v1458 = vmul.f32 %v1456, %v1231
  %v1459 = vpack.c.bf16 %v1442, %v1441
  %v1460 = vpack.c.bf16 %v1422, %v1421
  %v1461 = vpack.c.bf16 %v1458, %v1457
  %v1462 = vld [vmem:[%s7] sm:$0xf]
  %v1463 = vld [vmem:[%s7 + $0x4] sm:$0xf]
  %v1466 = vunpack.c.l.b16 %v1462
  %v1467 = vunpack.c.l.b16 %v1463
  %v1468 = vpack.c.b16 %v1467, %v1466
  %v1470 = vsel %vm1244, %v1468, 0
  %1472 = vmatprep.subr.bf16.mxu0 0
  %1473 = vmatpush1.bf16.msra.mxu0 %v1459
  %1474 = vmatprep.subr.bf16.mxu0 0
  %1475 = vmatpush1.bf16.msra.mxu0 %v1460
  %1476 = vmatprep.subr.bf16.mxu0 0
  %1477 = vmatpush1.bf16.msra.mxu0 %v1461
  %1478 = vmatprep.subr.bf16.mxu0 0
  %1479 = vmatpush1.bf16.msra.mxu0 0
  %1480 = vmatprep.subr.bf16.mxu0 0
  %1481 = vmatpush1.bf16.msra.mxu0 0
  %1482 = vmatprep.subr.bf16.mxu0 0
  %1483 = vmatpush1.bf16.msra.mxu0 0
  %1484 = vmatprep.subr.bf16.mxu0 0
  %1485 = vmatpush1.bf16.msra.mxu0 0
  %1486 = vmatprep.subr.bf16.mxu0 0
  %1487 = vmatpush1.bf16.msra.mxu0 0
  %1488 = vmatprep.subr.bf16.mxu0 0
  %1489 = vmatpush1.bf16.msra.mxu0 0
  %1490 = vmatprep.subr.bf16.mxu0 0
  %1491 = vmatpush1.bf16.msra.mxu0 0
  %1492 = vmatprep.subr.bf16.mxu0 0
  %1493 = vmatpush1.bf16.msra.mxu0 0
  %1494 = vmatprep.subr.bf16.mxu0 0
  %1495 = vmatpush1.bf16.msra.mxu0 0
  %1496 = vmatprep.subr.bf16.mxu0 0
  %1497 = vmatpush1.bf16.msra.mxu0 0
  %1498 = vmatprep.subr.bf16.mxu0 0
  %1499 = vmatpush1.bf16.msra.mxu0 0
  %1500 = vmatprep.subr.bf16.mxu0 0
  %1501 = vmatpush1.bf16.msra.mxu0 0
  %1502 = vmatprep.subr.bf16.mxu0 0
  %1503 = vmatpush1.bf16.msra.mxu0 0
  %1504 = vmatprep.mubr.bf16.mxu0 0
  %1505 = vmatmul.mubr.bf16.gmra.mrb[0].mxu0 %v1470
  %v1506 = vpop.f32.mrb[0].mxu0
  %v1507 = vadd.f32 0.0, %v1506
  %v1508 = vpop.f32.mrb[0].mxu0
  %v1509 = vpop.f32.mrb[0].mxu0
  %v1510 = vadd.f32 0.0, %v1509
  %v1511 = vpop.f32.mrb[0].mxu0
  %1512 = vdwg.mxu0
  %v1513 = vpack.c.bf16 %v1510, %v1507
  %v1514 = vld [vmem:[%s9] sm:$0xf]
  %v1515 = vld [vmem:[%s9 + $0x4] sm:$0xf]
  %v1516 = vld [vmem:[%s9 + $0x8] sm:$0xf]
  %v1517 = vld [vmem:[%s9 + $0xc] sm:$0xf]
  %v1518 = vld [vmem:[%s9 + $0x10] sm:$0xf]
  %v1519 = vld [vmem:[%s9 + $0x14] sm:$0xf]
  %v1520 = vld [vmem:[%s9 + $0x18] sm:$0xf]
  %v1521 = vld [vmem:[%s9 + $0x1c] sm:$0xf]
  %v1522 = vld [vmem:[%s9 + $0x20] sm:$0xf]
  %v1523 = vld [vmem:[%s9 + $0x24] sm:$0xf]
  %v1524 = vld [vmem:[%s9 + $0x28] sm:$0xf]
  %v1525 = vld [vmem:[%s9 + $0x2c] sm:$0xf]
  %v1526 = vld [vmem:[%s9 + $0x30] sm:$0xf]
  %v1527 = vld [vmem:[%s9 + $0x34] sm:$0xf]
  %v1528 = vld [vmem:[%s9 + $0x38] sm:$0xf]
  %v1529 = vld [vmem:[%s9 + $0x3c] sm:$0xf]
  %v1531 = vrot.slane %v1513, 4
  %v1540 = vunpack.c.l.b16 %v1522
  %v1541 = vunpack.c.l.b16 %v1523
  %v1542 = vunpack.c.l.b16 %v1524
  %v1543 = vunpack.c.l.b16 %v1525
  %v1544 = vunpack.c.l.b16 %v1526
  %v1545 = vunpack.c.l.b16 %v1527
  %v1546 = vunpack.c.l.b16 %v1528
  %v1547 = vunpack.c.l.b16 %v1529
  %v1548 = vpack.c.b16 %v1541, %v1540
  %v1549 = vpack.c.b16 %v1543, %v1542
  %v1550 = vpack.c.b16 %v1545, %v1544
  %v1551 = vpack.c.b16 %v1547, %v1546
  %v1557 = vsel %vm284, %v1531, 0
  %1559 = vmatprep.subr.bf16.mxu0 0
  %1560 = vmatpush1.bf16.msra.mxu0 %v1548
  %1561 = vmatprep.subr.bf16.mxu0 0
  %1562 = vmatpush1.bf16.msra.mxu0 %v1549
  %1563 = vmatprep.subr.bf16.mxu0 0
  %1564 = vmatpush1.bf16.msra.mxu0 %v1550
  %1565 = vmatprep.subr.bf16.mxu0 0
  %1566 = vmatpush1.bf16.msra.mxu0 %v1551
  %1567 = vmatprep.subr.bf16.mxu0 0
  %1568 = vmatpush1.bf16.msra.mxu0 0
  %1569 = vmatprep.subr.bf16.mxu0 0
  %1570 = vmatpush1.bf16.msra.mxu0 0
  %1571 = vmatprep.subr.bf16.mxu0 0
  %1572 = vmatpush1.bf16.msra.mxu0 0
  %1573 = vmatprep.subr.bf16.mxu0 0
  %1574 = vmatpush1.bf16.msra.mxu0 0
  %1575 = vmatprep.subr.bf16.mxu0 0
  %1576 = vmatpush1.bf16.msra.mxu0 0
  %1577 = vmatprep.subr.bf16.mxu0 0
  %1578 = vmatpush1.bf16.msra.mxu0 0
  %1579 = vmatprep.subr.bf16.mxu0 0
  %1580 = vmatpush1.bf16.msra.mxu0 0
  %1581 = vmatprep.subr.bf16.mxu0 0
  %1582 = vmatpush1.bf16.msra.mxu0 0
  %1583 = vmatprep.subr.bf16.mxu0 0
  %1584 = vmatpush1.bf16.msra.mxu0 0
  %1585 = vmatprep.subr.bf16.mxu0 0
  %1586 = vmatpush1.bf16.msra.mxu0 0
  %1587 = vmatprep.subr.bf16.mxu0 0
  %1588 = vmatpush1.bf16.msra.mxu0 0
  %1589 = vmatprep.subr.bf16.mxu0 0
  %1590 = vmatpush1.bf16.msra.mxu0 0
  %1591 = vmatprep.mubr.bf16.mxu0 0
  %1592 = vmatmul.mubr.bf16.gmra.mrb[0].mxu0 %v1557
  %v1593 = vpop.f32.mrb[0].mxu0
  %v1594 = vadd.f32 0.0, %v1593
  %v1595 = vpop.f32.mrb[0].mxu0
  %v1596 = vpop.f32.mrb[0].mxu0
  %v1597 = vpop.f32.mrb[0].mxu0
  %1598 = vdwg.mxu0
  %v1607 = vunpack.c.l.b16 %v1514
  %v1608 = vunpack.c.l.b16 %v1515
  %v1609 = vunpack.c.l.b16 %v1516
  %v1610 = vunpack.c.l.b16 %v1517
  %v1611 = vunpack.c.l.b16 %v1518
  %v1612 = vunpack.c.l.b16 %v1519
  %v1613 = vunpack.c.l.b16 %v1520
  %v1614 = vunpack.c.l.b16 %v1521
  %v1615 = vpack.c.b16 %v1608, %v1607
  %v1616 = vpack.c.b16 %v1610, %v1609
  %v1617 = vpack.c.b16 %v1612, %v1611
  %v1618 = vpack.c.b16 %v1614, %v1613
  %v1624 = vsel %vm284, %v1513, 0
  %1626 = vmatprep.subr.bf16.mxu0 0
  %1627 = vmatpush1.bf16.msra.mxu0 %v1615
  %1628 = vmatprep.subr.bf16.mxu0 0
  %1629 = vmatpush1.bf16.msra.mxu0 %v1616
  %1630 = vmatprep.subr.bf16.mxu0 0
  %1631 = vmatpush1.bf16.msra.mxu0 %v1617
  %1632 = vmatprep.subr.bf16.mxu0 0
  %1633 = vmatpush1.bf16.msra.mxu0 %v1618
  %1634 = vmatprep.subr.bf16.mxu0 0
  %1635 = vmatpush1.bf16.msra.mxu0 0
  %1636 = vmatprep.subr.bf16.mxu0 0
  %1637 = vmatpush1.bf16.msra.mxu0 0
  %1638 = vmatprep.subr.bf16.mxu0 0
  %1639 = vmatpush1.bf16.msra.mxu0 0
  %1640 = vmatprep.subr.bf16.mxu0 0
  %1641 = vmatpush1.bf16.msra.mxu0 0
  %1642 = vmatprep.subr.bf16.mxu0 0
  %1643 = vmatpush1.bf16.msra.mxu0 0
  %1644 = vmatprep.subr.bf16.mxu0 0
  %1645 = vmatpush1.bf16.msra.mxu0 0
  %1646 = vmatprep.subr.bf16.mxu0 0
  %1647 = vmatpush1.bf16.msra.mxu0 0
  %1648 = vmatprep.subr.bf16.mxu0 0
  %1649 = vmatpush1.bf16.msra.mxu0 0
  %1650 = vmatprep.subr.bf16.mxu0 0
  %1651 = vmatpush1.bf16.msra.mxu0 0
  %1652 = vmatprep.subr.bf16.mxu0 0
  %1653 = vmatpush1.bf16.msra.mxu0 0
  %1654 = vmatprep.subr.bf16.mxu0 0
  %1655 = vmatpush1.bf16.msra.mxu0 0
  %1656 = vmatprep.subr.bf16.mxu0 0
  %1657 = vmatpush1.bf16.msra.mxu0 0
  %1658 = vmatprep.mubr.bf16.mxu0 0
  %1659 = vmatmul.mubr.bf16.gmra.mrb[0].mxu0 %v1624
  %v1660 = vpop.f32.mrb[0].mxu0
  %v1661 = vadd.f32 %v1594, %v1660
  %v1662 = vpop.f32.mrb[0].mxu0
  %v1663 = vpop.f32.mrb[0].mxu0
  %v1664 = vpop.f32.mrb[0].mxu0
  %1665 = vdwg.mxu0
  %v1666 = vld [vmem:[%s10] sm:$0xff]
  %1668 = vset.pattern.permute.xlu0 10
  %1669 = vperm.xlu0 %1668, %v1666
  %v1670 = vpop.permute.xlu0 %1669
  %v1672 = vadd.f32 %v1661, %v1670
  %1674 = vrot.lane.b32.xlu0 %v1672, 1
  %v1675 = vpop.permute.xlu0 %1674
  %v1677 = vlaneseq
  %v1678 = vshrl.u32 %v1677, 7
  %v1679 = vsub.s32 0, %v1678
  %v1680 = vrot.slane %v1423, %v1679
  %v1681 = vmul.f32 %v1675, %v1680
  %1682 = vrot.lane.b32.xlu0 %v1672, 127
  %v1683 = vpop.permute.xlu0 %1682
  %v1685 = vlaneseq
  %v1686 = vshrl.u32 %v1685, 7
  %v1687 = vsub.s32 0, %v1686
  %v1688 = vrot.slane %v1424, %v1687
  %v1689 = vmul.f32 %v1683, %v1688
  %v1690 = vpack.c.bf16 %v1681, %v1681
  %v1691 = vpack.c.bf16 %v1672, %v1672
  %v1692 = vpack.c.bf16 %v1689, %v1689
  %v1694 = vrot.slane %v1691, 4
  %vm1695 = vcmask 1043456
  %v1698 = vsel %vm1695, %v1690, %v1694
  %v1700 = vld [vmem:[%s8] sm:$0xf]
  %vm1701 = vcmask 195584
  %v1703 = vsel %vm1701, %v1700, 0
  %v1706 = vsel %vm1695, %v1692, 0
  %1708 = vmatprep.subr.bf16.mxu0 0
  %1709 = vmatpush1.bf16.msra.mxu0 %v1698
  %1710 = vmatprep.subr.bf16.mxu0 0
  %1711 = vmatpush1.bf16.msra.mxu0 %v1706
  %1712 = vmatprep.subr.bf16.mxu0 0
  %1713 = vmatpush1.bf16.msra.mxu0 0
  %1714 = vmatprep.subr.bf16.mxu0 0
  %1715 = vmatpush1.bf16.msra.mxu0 0
  %1716 = vmatprep.subr.bf16.mxu0 0
  %1717 = vmatpush1.bf16.msra.mxu0 0
  %1718 = vmatprep.subr.bf16.mxu0 0
  %1719 = vmatpush1.bf16.msra.mxu0 0
  %1720 = vmatprep.subr.bf16.mxu0 0
  %1721 = vmatpush1.bf16.msra.mxu0 0
  %1722 = vmatprep.subr.bf16.mxu0 0
  %1723 = vmatpush1.bf16.msra.mxu0 0
  %1724 = vmatprep.subr.bf16.mxu0 0
  %1725 = vmatpush1.bf16.msra.mxu0 0
  %1726 = vmatprep.subr.bf16.mxu0 0
  %1727 = vmatpush1.bf16.msra.mxu0 0
  %1728 = vmatprep.subr.bf16.mxu0 0
  %1729 = vmatpush1.bf16.msra.mxu0 0
  %1730 = vmatprep.subr.bf16.mxu0 0
  %1731 = vmatpush1.bf16.msra.mxu0 0
  %1732 = vmatprep.subr.bf16.mxu0 0
  %1733 = vmatpush1.bf16.msra.mxu0 0
  %1734 = vmatprep.subr.bf16.mxu0 0
  %1735 = vmatpush1.bf16.msra.mxu0 0
  %1736 = vmatprep.subr.bf16.mxu0 0
  %1737 = vmatpush1.bf16.msra.mxu0 0
  %1738 = vmatprep.subr.bf16.mxu0 0
  %1739 = vmatpush1.bf16.msra.mxu0 0
  %1740 = vmatprep.mubr.bf16.mxu0 0
  %1741 = vmatmul.mubr.bf16.gmra.mrb[0].mxu0 %v1703
  %v1742 = vpop.f32.mrb[0].mxu0
  %v1743 = vadd.f32 0.0, %v1742
  %v1744 = vpop.f32.mrb[0].mxu0
  %v1745 = vpop.f32.mrb[0].mxu0
  %v1746 = vpop.f32.mrb[0].mxu0
  %1747 = vdwg.mxu0
  %1748 = vset.pattern.permute.xlu0 11
  %1749 = vperm.xlu0 %1748, %v1666
  %v1750 = vpop.permute.xlu0 %1749
  %v1752 = vmul.f32 %v1743, %v1750
  %1753 = vset.pattern.permute.xlu0 12
  %1754 = vperm.xlu0 %1753, %v1666
  %v1755 = vpop.permute.xlu0 %1754
  %v1757 = vadd.f32 %v1752, %v1755
  %v1758 = vmax.f32 %v1757, 0.0
  %1760 = vrot.lane.b32.xlu0 %v1758, 1
  %v1761 = vpop.permute.xlu0 %1760
  %v1763 = vmul.f32 %v1761, %v1680
  %1764 = vrot.lane.b32.xlu0 %v1758, 127
  %v1765 = vpop.permute.xlu0 %1764
  %v1767 = vmul.f32 %v1765, %v1688
  %v1768 = vpack.c.bf16 %v1763, %v1763
  %v1769 = vpack.c.bf16 %v1758, %v1758
  %v1770 = vpack.c.bf16 %v1767, %v1767
  %v1772 = vrot.slane %v1769, 4
  %v1775 = vsel %vm1695, %v1768, %v1772
  %v1777 = vld [vmem:[%s8 + $0x4] sm:$0xf]
  %v1779 = vsel %vm1701, %v1777, 0
  %v1782 = vsel %vm1695, %v1770, 0
  %1784 = vmatprep.subr.bf16.mxu0 0
  %1785 = vmatpush1.bf16.msra.mxu0 %v1775
  %1786 = vmatprep.subr.bf16.mxu0 0
  %1787 = vmatpush1.bf16.msra.mxu0 %v1782
  %1788 = vmatprep.subr.bf16.mxu0 0
  %1789 = vmatpush1.bf16.msra.mxu0 0
  %1790 = vmatprep.subr.bf16.mxu0 0
  %1791 = vmatpush1.bf16.msra.mxu0 0
  %1792 = vmatprep.subr.bf16.mxu0 0
  %1793 = vmatpush1.bf16.msra.mxu0 0
  %1794 = vmatprep.subr.bf16.mxu0 0
  %1795 = vmatpush1.bf16.msra.mxu0 0
  %1796 = vmatprep.subr.bf16.mxu0 0
  %1797 = vmatpush1.bf16.msra.mxu0 0
  %1798 = vmatprep.subr.bf16.mxu0 0
  %1799 = vmatpush1.bf16.msra.mxu0 0
  %1800 = vmatprep.subr.bf16.mxu0 0
  %1801 = vmatpush1.bf16.msra.mxu0 0
  %1802 = vmatprep.subr.bf16.mxu0 0
  %1803 = vmatpush1.bf16.msra.mxu0 0
  %1804 = vmatprep.subr.bf16.mxu0 0
  %1805 = vmatpush1.bf16.msra.mxu0 0
  %1806 = vmatprep.subr.bf16.mxu0 0
  %1807 = vmatpush1.bf16.msra.mxu0 0
  %1808 = vmatprep.subr.bf16.mxu0 0
  %1809 = vmatpush1.bf16.msra.mxu0 0
  %1810 = vmatprep.subr.bf16.mxu0 0
  %1811 = vmatpush1.bf16.msra.mxu0 0
  %1812 = vmatprep.subr.bf16.mxu0 0
  %1813 = vmatpush1.bf16.msra.mxu0 0
  %1814 = vmatprep.subr.bf16.mxu0 0
  %1815 = vmatpush1.bf16.msra.mxu0 0
  %1816 = vmatprep.mubr.bf16.mxu0 0
  %1817 = vmatmul.mubr.bf16.gmra.mrb[0].mxu0 %v1779
  %v1818 = vpop.f32.mrb[0].mxu0
  %v1819 = vadd.f32 0.0, %v1818
  %v1820 = vpop.f32.mrb[0].mxu0
  %v1821 = vpop.f32.mrb[0].mxu0
  %v1822 = vpop.f32.mrb[0].mxu0
  %1823 = vdwg.mxu0
  %1824 = vset.pattern.permute.xlu0 13
  %1825 = vperm.xlu0 %1824, %v1666
  %v1826 = vpop.permute.xlu0 %1825
  %v1828 = vmul.f32 %v1819, %v1826
  %1829 = vset.pattern.permute.xlu0 14
  %1830 = vperm.xlu0 %1829, %v1666
  %v1831 = vpop.permute.xlu0 %1830
  %v1833 = vadd.f32 %v1828, %v1831
  %v1834 = vadd.f32 %v1833, %v1672
  %v1835 = vmax.f32 %v1834, 0.0
  %1837 = vrot.lane.b32.xlu0 %v1835, 1
  %v1838 = vpop.permute.xlu0 %1837
  %v1840 = vmul.f32 %v1838, %v1680
  %1841 = vrot.lane.b32.xlu0 %v1835, 127
  %v1842 = vpop.permute.xlu0 %1841
  %v1844 = vmul.f32 %v1842, %v1688
  %v1845 = vld [vmem:[%s10] sm:$0xff]
  %v1846 = vld [vmem:[%s10 + $0x8] sm:$0xff]
  %v1847 = vld [vmem:[%s10 + $0x10] sm:$0xff]
  %v1848 = vld [vmem:[%s10] sm:$0x1]
  %1850 = vset.pattern.permute.xlu0 15
  %1851 = vperm.xlu0 %1850, %v1845
  %v1852 = vpop.permute.xlu0 %1851
  %1855 = vset.pattern.permute.xlu0 15
  %1856 = vperm.xlu0 %1855, %v1846
  %v1857 = vpop.permute.xlu0 %1856
  %1860 = vset.pattern.permute.xlu0 15
  %1861 = vperm.xlu0 %1860, %v1847
  %v1862 = vpop.permute.xlu0 %1861
  %v1864 = vmul.f32 %v1840, %v1852
  %v1865 = vmul.f32 %v1835, %v1857
  %v1866 = vmul.f32 %v1844, %v1862
  %v1867 = vadd.f32 %v1864, %v1865
  %v1868 = vadd.f32 %v1867, %v1866
  %v1869 = vrot.slane %v1868, 4
  %v1870 = vadd.f32 %v1868, %v1869
  %v1871 = vrot.slane %v1870, 2
  %v1872 = vadd.f32 %v1870, %v1871
  %v1873 = vrot.slane %v1872, 1
  %v1874 = vadd.f32 %v1872, %v1873
  %1876 = vset.pattern.permute.xlu0 16
  %1877 = vperm.xlu0 %1876, %v1848
  %v1878 = vpop.permute.xlu0 %1877
  %v1880 = vadd.f32 %v1874, %v1878
  %v1881 = vxor.u32 %v1880, 2147483648
  %v1882 = vmul.f32 %v1881, 1.442695
  %v1883 = vpow.pop %v1882
  %v1884 = vadd.f32 %v1883, 1.0
  %v1885 = vrcp.pop %v1884
  %v1886 = vmul.f32 1.0, %v1885
  %1887 = vst [vmem:[%s12] sm:$0x1] %v1886
  // Predicated region
  $region50: #{decoder_forward.3} parent=0 // pred_check
    _
  $region51: #{decoder_forward.3} parent=0 // pred_check_branch
    %1889 = sbr.rel (0) target = $region53
  $region52: #{decoder_forward.3} parent=0 // pred_region
    _
  $region53: #{decoder_forward.3} parent=0 // pred_fallthru
    _
  // Predicated region
  $region54: #{decoder_forward.3} parent=0 // pred_check
    _
  $region55: #{decoder_forward.3} parent=0 // pred_check_branch
    %1891 = sbr.rel (0) target = $region57
  $region56: #{decoder_forward.3} parent=0 // pred_region
    _
  $region57: #{decoder_forward.3} parent=0 // pred_fallthru
    _

</llo_original>
